<compile_context>
chip_gen: v5e
topology: v5e:2x2
jax: 0.10.0
libtpu: 0.0.40
codegen_flags: <defaults>
</compile_context>

<pallas_src>
from functools import partial

import numpy as np
import jax
import jax.numpy as jnp
from jax import lax
from jax.experimental import pallas as pl
from jax.experimental.pallas import tpu as pltpu

EPS = 1e-5
INV_SQRT2 = 1.0 / np.sqrt(2.0)


# ----------------------------- kernel helpers -----------------------------
def _gelu(x):
    # exact GELU (PyTorch nn.GELU default)
    return 0.5 * x * (1.0 + lax.erf(x * INV_SQRT2))


def _conv3x3_taps(slab_ref, w, mask_l, mask_r, *, width, margin):
    """9-tap 3x3 conv on a (channels x flat-pixels) slab with zero margins.

    slab_ref : (Cin, 2*margin + P) VMEM ref; interior [margin, margin+P) holds
               the image flattened as p = r*W + c, margins are zero.
    w        : (9, Cout, Cin) weights, tap = ky*3 + kx.
    mask_l/r : (1, P) 0/1 masks killing horizontal wrap-around reads.
    Vertical out-of-range taps land in the zero margins, so only the
    horizontal component needs masking.
    """
    p = mask_l.shape[-1]
    acc = None
    for tap in range(9):
        oy, ox = tap // 3 - 1, tap % 3 - 1
        start = margin + oy * width + ox
        xt = slab_ref[:, start:start + p]          # static ref-sliced load
        if ox == 1:
            xt = xt * mask_r
        elif ox == -1:
            xt = xt * mask_l
        d = jnp.dot(w[tap], xt, preferred_element_type=jnp.float32)
        acc = d if acc is None else acc + d
    return acc


# ------------------------------- kernel 1 ----------------------------------
def _conv1_kernel(x_ref, skip_ref, mup_ref, edge_ref, w1_ref, b1_ref,
                  y1_ref, s1_ref, q1_ref, slab_ref, *, width, margin):
    """Fused upsample + concat + 3x3 conv (raw) + per-image BN1 partials."""
    C2, P4 = x_ref.shape[1], x_ref.shape[2]
    D, P = skip_ref.shape[1], skip_ref.shape[2]
    C3 = C2 + D
    M = margin

    # border-only zeroing: just the two margin strips (interior overwritten)
    slab_ref[:, 0:M] = jnp.zeros((C3, M), jnp.float32)
    slab_ref[:, M + P:M + P + M] = jnp.zeros((C3, M), jnp.float32)

    # nearest-2x upsample as one MXU matmul against a 0/1 matrix; the channel
    # concat cat(up, skip) is just two row ranges of the same slab.
    up = jnp.dot(x_ref[...].reshape(C2, P4), mup_ref[...],
                 preferred_element_type=jnp.float32)
    slab_ref[0:C2, M:M + P] = up
    slab_ref[C2:C3, M:M + P] = skip_ref[...].reshape(D, P)

    y1 = _conv3x3_taps(slab_ref, w1_ref[...],
                       edge_ref[0:1, :], edge_ref[1:2, :],
                       width=width, margin=M) + b1_ref[...]

    y1_ref[...] = y1.reshape(1, D, P).astype(y1_ref.dtype)
    # per-image partial statistics for training-mode batch norm
    s1_ref[...] = jnp.sum(y1, axis=1, keepdims=True).reshape(1, D, 1)
    q1_ref[...] = jnp.sum(y1 * y1, axis=1, keepdims=True).reshape(1, D, 1)


# ------------------------------- kernel 2 ----------------------------------
def _conv2_kernel(y1_ref, sc1_ref, sh1_ref, edge_ref, w2_ref, b2_ref,
                  y2_ref, s2_ref, q2_ref, slab_ref, *, width, margin):
    """BN1 (pre-folded scale/shift) + GELU + 3x3 conv (raw) + BN2 partials."""
    D, P = y1_ref.shape[1], y1_ref.shape[2]
    M = margin

    slab_ref[:, 0:M] = jnp.zeros((D, M), jnp.float32)
    slab_ref[:, M + P:M + P + M] = jnp.zeros((D, M), jnp.float32)

    t1 = _gelu(y1_ref[...].reshape(D, P).astype(jnp.float32)
               * sc1_ref[...] + sh1_ref[...])
    slab_ref[:, M:M + P] = t1

    y2 = _conv3x3_taps(slab_ref, w2_ref[...],
                       edge_ref[0:1, :], edge_ref[1:2, :],
                       width=width, margin=M) + b2_ref[...]

    y2_ref[...] = y2.reshape(1, D, P).astype(y2_ref.dtype)
    s2_ref[...] = jnp.sum(y2, axis=1, keepdims=True).reshape(1, D, 1)
    q2_ref[...] = jnp.sum(y2 * y2, axis=1, keepdims=True).reshape(1, D, 1)


# ------------------------------- kernel 3 ----------------------------------
def _epilogue_kernel(y2_ref, sc2_ref, sh2_ref, x_ref, skip_ref, mup_ref,
                     wsx_ref, wss_ref, bs_ref, out_ref):
    """BN2 + GELU + 1x1-conv skip path + residual add; tiled over (N, pixels)."""
    C2, P4 = x_ref.shape[1], x_ref.shape[2]
    D, TP = y2_ref.shape[1], y2_ref.shape[2]

    # skip path first (MXU work) so it overlaps the elementwise BN/GELU below.
    up = jnp.dot(x_ref[...].reshape(C2, P4), mup_ref[...],
                 preferred_element_type=jnp.float32)
    ys = (jnp.dot(wsx_ref[...], up, preferred_element_type=jnp.float32)
          + jnp.dot(wss_ref[...], skip_ref[...].reshape(D, TP),
                    preferred_element_type=jnp.float32)
          + bs_ref[...])

    act = _gelu(y2_ref[...].reshape(D, TP).astype(jnp.float32)
                * sc2_ref[...] + sh2_ref[...])
    out_ref[...] = (act + ys).reshape(1, D, TP).astype(out_ref.dtype)


# ------------------------------ python wrapper ------------------------------
def _compiler_params(sems, block_shapes, scratch_shapes=()):
    """dimension_semantics + VMEM budget from block sizes and chip capacity."""
    blocks = sum(int(np.prod(s)) for s in block_shapes) * 4
    scratch = sum(int(np.prod(s)) for s in scratch_shapes) * 4
    need = 2 * blocks + scratch + (4 << 20)      # 2x: Pallas double-buffering
    try:
        cap = int(pltpu.get_tpu_info().vmem_capacity_bytes)
    except Exception:
        cap = 64 << 20                            # conservative (v7x per-TC)
    limit = int(min(max(need, 16 << 20), int(0.6 * cap)))
    return pltpu.CompilerParams(dimension_semantics=sems,
                                vmem_limit_bytes=limit)


def _pick_tile(p, max_tile=2048):
    """Largest 128-multiple divisor of p below max_tile (whole image if small)."""
    if p <= max_tile:
        return p
    for cand in range(max_tile, 127, -128):
        if p % cand == 0:
            return cand
    return p


def _bn_scale_shift(s, q, gamma, beta, count):
    """Finalize training-mode BN from per-image partial sums -> scale/shift."""
    total = jnp.sum(s[:, :, 0], axis=0)
    totalsq = jnp.sum(q[:, :, 0], axis=0)
    mean = total / count
    var = totalsq / count - mean * mean            # biased (training mode)
    inv = lax.rsqrt(jnp.maximum(var, 0.0) + EPS)
    scale = gamma * inv
    shift = beta - mean * scale
    d = scale.shape[0]
    return scale.reshape(d, 1), shift.reshape(d, 1)


def decoder_block(x_nchw, skip_nchw, params, *, interm_dtype=jnp.float32):
    """x: [N, 2D, H/2, W/2], skip: [N, D, H, W] -> [N, D, H, W] (NCHW)."""
    (w1, b1, g1, be1, w2, b2, g2, be2, wsx, wss, bs) = params
    N, C2, hh, ww = x_nchw.shape
    _, D, H, W = skip_nchw.shape
    assert H == 2 * hh and W == 2 * ww
    C3 = C2 + D
    P4, P = hh * ww, H * W
    M = max(128, pl.cdiv(W + 1, 128) * 128)        # zero margin (>= W+1, aligned)
    f32 = jnp.float32

    # NCHW with the spatial dims flattened IS the compute layout (pixels on
    # lanes) -> metadata reshapes only, no transposes.
    x = x_nchw.reshape(N, C2, P4).astype(f32)
    skip = skip_nchw.reshape(N, D, P).astype(f32)

    # host-side constants: nearest-2x upsample as a 0/1 matmul matrix and the
    # two horizontal wrap-around masks for the flat-pixel conv taps.
    src = ((np.arange(H)[:, None] // 2) * ww
           + (np.arange(W)[None, :] // 2)).reshape(-1)                # (P,)
    mup = jnp.asarray(np.arange(P4)[:, None] == src[None, :], f32)    # (P4, P)
    col = np.arange(P) % W
    edge = jnp.asarray(np.stack([col != 0, col != W - 1]), f32)       # (2, P)

    # -- pass 1: upsample + concat + conv1 (raw) + BN1 partial sums ----------
    p1_blocks = [(1, C2, P4), (1, D, P), (P4, P), (2, P), (9, D, C3), (D, 1),
                 (1, D, P), (1, D, 1), (1, D, 1)]
    y1, s1, q1 = pl.pallas_call(
        partial(_conv1_kernel, width=W, margin=M),
        grid=(N,),
        in_specs=[
            pl.BlockSpec((1, C2, P4), lambda n: (n, 0, 0)),
            pl.BlockSpec((1, D, P), lambda n: (n, 0, 0)),
            pl.BlockSpec((P4, P), lambda n: (0, 0)),
            pl.BlockSpec((2, P), lambda n: (0, 0)),
            pl.BlockSpec((9, D, C3), lambda n: (0, 0, 0)),
            pl.BlockSpec((D, 1), lambda n: (0, 0)),
        ],
        out_specs=(
            pl.BlockSpec((1, D, P), lambda n: (n, 0, 0)),
            pl.BlockSpec((1, D, 1), lambda n: (n, 0, 0)),
            pl.BlockSpec((1, D, 1), lambda n: (n, 0, 0)),
        ),
        out_shape=(
            jax.ShapeDtypeStruct((N, D, P), interm_dtype),
            jax.ShapeDtypeStruct((N, D, 1), f32),
            jax.ShapeDtypeStruct((N, D, 1), f32),
        ),
        scratch_shapes=[pltpu.VMEM((C3, 2 * M + P), f32)],
        compiler_params=_compiler_params(("parallel",), p1_blocks,
                                         [(C3, 2 * M + P)]),
    )(x, skip, mup, edge, w1, b1)

    # BN1 finalize on tiny [N, D] partials in plain XLA (per review)
    sc1, sh1 = _bn_scale_shift(s1, q1, g1, be1, float(N * P))

    # -- pass 2: BN1 apply + GELU + conv2 (raw) + BN2 partial sums -----------
    p2_blocks = [(1, D, P), (D, 1), (D, 1), (2, P), (9, D, D), (D, 1),
                 (1, D, P), (1, D, 1), (1, D, 1)]
    y2, s2, q2 = pl.pallas_call(
        partial(_conv2_kernel, width=W, margin=M),
        grid=(N,),
        in_specs=[
            pl.BlockSpec((1, D, P), lambda n: (n, 0, 0)),
            pl.BlockSpec((D, 1), lambda n: (0, 0)),
            pl.BlockSpec((D, 1), lambda n: (0, 0)),
            pl.BlockSpec((2, P), lambda n: (0, 0)),
            pl.BlockSpec((9, D, D), lambda n: (0, 0, 0)),
            pl.BlockSpec((D, 1), lambda n: (0, 0)),
        ],
        out_specs=(
            pl.BlockSpec((1, D, P), lambda n: (n, 0, 0)),
            pl.BlockSpec((1, D, 1), lambda n: (n, 0, 0)),
            pl.BlockSpec((1, D, 1), lambda n: (n, 0, 0)),
        ),
        out_shape=(
            jax.ShapeDtypeStruct((N, D, P), interm_dtype),
            jax.ShapeDtypeStruct((N, D, 1), f32),
            jax.ShapeDtypeStruct((N, D, 1), f32),
        ),
        scratch_shapes=[pltpu.VMEM((D, 2 * M + P), f32)],
        compiler_params=_compiler_params(("parallel",), p2_blocks,
                                         [(D, 2 * M + P)]),
    )(y1, sc1, sh1, edge, w2, b2)

    sc2, sh2 = _bn_scale_shift(s2, q2, g2, be2, float(N * P))

    # -- pass 3: BN2 apply + GELU + 1x1 skip conv + residual -----------------
    TP = _pick_tile(P)
    nT = P // TP
    p3_blocks = [(1, D, TP), (D, 1), (D, 1), (1, C2, P4), (1, D, TP),
                 (P4, TP), (D, C2), (D, D), (D, 1), (1, D, TP)]
    out = pl.pallas_call(
        _epilogue_kernel,
        grid=(N, nT),
        in_specs=[
            pl.BlockSpec((1, D, TP), lambda n, t: (n, 0, t)),
            pl.BlockSpec((D, 1), lambda n, t: (0, 0)),
            pl.BlockSpec((D, 1), lambda n, t: (0, 0)),
            pl.BlockSpec((1, C2, P4), lambda n, t: (n, 0, 0)),
            pl.BlockSpec((1, D, TP), lambda n, t: (n, 0, t)),
            pl.BlockSpec((P4, TP), lambda n, t: (0, t)),
            pl.BlockSpec((D, C2), lambda n, t: (0, 0)),
            pl.BlockSpec((D, D), lambda n, t: (0, 0)),
            pl.BlockSpec((D, 1), lambda n, t: (0, 0)),
        ],
        out_specs=pl.BlockSpec((1, D, TP), lambda n, t: (n, 0, t)),
        out_shape=jax.ShapeDtypeStruct((N, D, P), f32),
        compiler_params=_compiler_params(("parallel", "parallel"), p3_blocks),
    )(y2, sc2, sh2, x, skip, mup, wsx, wss, bs)

    return out.reshape(N, D, H, W)


# ----------------------- deterministic parameter init -----------------------
def init_params(key, out_dim):
    D = out_dim
    C2, C3 = 2 * D, 3 * D
    ks = jax.random.split(key, 10)
    # PyTorch-layout weights (OIHW), then convert to kernel layouts.
    w1_t = 0.1 * jax.random.normal(ks[0], (D, C3, 3, 3), jnp.float32)
    b1 = 0.1 * jax.random.normal(ks[1], (D,), jnp.float32)
    g1 = 1.0 + 0.1 * jax.random.normal(ks[2], (D,), jnp.float32)
    be1 = 0.1 * jax.random.normal(ks[3], (D,), jnp.float32)
    w2_t = 0.1 * jax.random.normal(ks[4], (D, D, 3, 3), jnp.float32)
    b2 = 0.1 * jax.random.normal(ks[5], (D,), jnp.float32)
    g2 = 1.0 + 0.1 * jax.random.normal(ks[6], (D,), jnp.float32)
    be2 = 0.1 * jax.random.normal(ks[7], (D,), jnp.float32)
    ws_t = 0.1 * jax.random.normal(ks[8], (D, C3, 1, 1), jnp.float32)
    bs = 0.1 * jax.random.normal(ks[9], (D,), jnp.float32)

    torch_layout = (w1_t, b1, g1, be1, w2_t, b2, g2, be2, ws_t, bs)

    # kernel layouts: 3x3 weights -> [tap = ky*3+kx, cout, cin] so every tap is
    # a ready-to-use (D, C3) lhs for the (channels x pixels) matmul; the 1x1
    # skip weight is split into its up / skip halves (concat folded away).
    w1_k = jnp.transpose(w1_t, (2, 3, 0, 1)).reshape(9, D, C3)
    w2_k = jnp.transpose(w2_t, (2, 3, 0, 1)).reshape(9, D, D)
    ws2 = ws_t.reshape(D, C3)
    kernel_layout = (w1_k, b1.reshape(D, 1), g1, be1,
                     w2_k, b2.reshape(D, 1), g2, be2,
                     ws2[:, :C2], ws2[:, C2:], bs.reshape(D, 1))
    return kernel_layout, torch_layout


# ------------------------------ JAX reference -------------------------------
def reference(x_nchw, skip_nchw, torch_params):
    (w1, b1, g1, be1, w2, b2, g2, be2, ws, bs) = torch_params

    def conv(x, w, b, pad):
        y = lax.conv_general_dilated(
            x, w, (1, 1), [(pad, pad), (pad, pad)],
            dimension_numbers=('NCHW', 'OIHW', 'NCHW'))
        return y + b[None, :, None, None]

    def bn(x, g, be):
        mean = jnp.mean(x, axis=(0, 2, 3), keepdims=True)
        var = jnp.mean((x - mean) ** 2, axis=(0, 2, 3), keepdims=True)
        return ((x - mean) * lax.rsqrt(var + EPS) * g[None, :, None, None]
                + be[None, :, None, None])

    up = jnp.repeat(jnp.repeat(x_nchw, 2, axis=2), 2, axis=3)
    xin = jnp.concatenate([up, skip_nchw], axis=1)
    y = _gelu(bn(conv(xin, w1, b1, 1), g1, be1))
    y = _gelu(bn(conv(y, w2, b2, 1), g2, be2))
    s = conv(xin, ws, bs, 0)
    return y + s


# ----------------------------------- main -----------------------------------
if __name__ == "__main__":
    key = jax.random.PRNGKey(0)
    k_x, k_s, k_p = jax.random.split(key, 3)

    out_dim = 4                        # D
    N, H0, W0 = 2, 8, 8                # x spatial (pre-upsample)
    x = jax.random.normal(k_x, (N, 2 * out_dim, H0, W0), jnp.float32)          # [2, 8, 8, 8]
    skip = jax.random.normal(k_s, (N, out_dim, 2 * H0, 2 * W0), jnp.float32)   # [2, 4, 16, 16]

    kernel_params, torch_params = init_params(k_p, out_dim)

    out = jax.block_until_ready(decoder_block(x, skip, kernel_params))
    ref = jax.block_until_ready(reference(x, skip, torch_params))
    np.testing.assert_allclose(np.asarray(out), np.asarray(ref),
                               rtol=2e-3, atol=2e-3)

    print("KERNEL_OK")
</pallas_src>

<mosaic_0001>
module attributes {stable_mosaic.version = 11 : i64} {
  func.func @_conv1_kernel(%arg0: i32, %arg1: memref<1x8x64xf32, #tpu.memory_space<vmem>>, %arg2: memref<1x4x256xf32, #tpu.memory_space<vmem>>, %arg3: memref<64x256xf32, #tpu.memory_space<vmem>>, %arg4: memref<2x256xf32, #tpu.memory_space<vmem>>, %arg5: memref<9x4x12xf32, #tpu.memory_space<vmem>>, %arg6: memref<4x1xf32, #tpu.memory_space<vmem>>, %arg7: memref<1x4x256xf32, #tpu.memory_space<vmem>>, %arg8: memref<1x4x1xf32, #tpu.memory_space<vmem>>, %arg9: memref<1x4x1xf32, #tpu.memory_space<vmem>>, %arg10: memref<12x512xf32, #tpu.memory_space<vmem>>) attributes {dimension_semantics = [#tpu.dimension_semantics<parallel>], iteration_bounds = array<i64: 2>, scalar_prefetch = 0 : i64, scratch_operands = 1 : i64, tpu.core_type = #tpu.core_type<tc>, window_params = [{transform_indices = @transform_0, window_bounds = array<i64: 1, 8, 64>}, {transform_indices = @transform_1, window_bounds = array<i64: 1, 4, 256>}, {pipeline_mode = #tpu.pipeline_mode<synchronous>, transform_indices = @transform_2, window_bounds = array<i64: 64, 256>}, {pipeline_mode = #tpu.pipeline_mode<synchronous>, transform_indices = @transform_3, window_bounds = array<i64: 2, 256>}, {pipeline_mode = #tpu.pipeline_mode<synchronous>, transform_indices = @transform_4, window_bounds = array<i64: 9, 4, 12>}, {pipeline_mode = #tpu.pipeline_mode<synchronous>, transform_indices = @transform_5, window_bounds = array<i64: 4, 1>}, {transform_indices = @transform_6, window_bounds = array<i64: 1, 4, 256>}, {transform_indices = @transform_7, window_bounds = array<i64: 1, 4, 1>}, {transform_indices = @transform_8, window_bounds = array<i64: 1, 4, 1>}]} {
    %cst = arith.constant 0.000000e+00 : f32
    %0 = vector.broadcast %cst : f32 to vector<12x128xf32>
    %c0 = arith.constant 0 : index
    %c0_0 = arith.constant 0 : index
    %1 = vector.load %arg10[%c0, %c0_0] : memref<12x512xf32, #tpu.memory_space<vmem>>, vector<12x128xf32>
    tpu.vector_store %arg10[%c0, %c0_0], %0 {strides = array<i32>} : memref<12x512xf32, #tpu.memory_space<vmem>>, vector<12x128xf32>,
    %cst_1 = arith.constant 0.000000e+00 : f32
    %2 = vector.broadcast %cst_1 : f32 to vector<12x128xf32>
    %c0_2 = arith.constant 0 : index
    %c384 = arith.constant 384 : index
    %3 = vector.load %arg10[%c0_2, %c384] : memref<12x512xf32, #tpu.memory_space<vmem>>, vector<12x128xf32>
    tpu.vector_store %arg10[%c0_2, %c384], %2 {strides = array<i32>} : memref<12x512xf32, #tpu.memory_space<vmem>>, vector<12x128xf32>,
    %c0_3 = arith.constant 0 : index
    %c0_4 = arith.constant 0 : index
    %c0_5 = arith.constant 0 : index
    %4 = vector.load %arg1[%c0_3, %c0_4, %c0_5] : memref<1x8x64xf32, #tpu.memory_space<vmem>>, vector<1x8x64xf32>
    %5 = vector.shape_cast %4 : vector<1x8x64xf32> to vector<8x64xf32>
    %c0_6 = arith.constant 0 : index
    %c0_7 = arith.constant 0 : index
    %6 = vector.load %arg3[%c0_6, %c0_7] : memref<64x256xf32, #tpu.memory_space<vmem>>, vector<64x256xf32>
    %cst_8 = arith.constant dense<0.000000e+00> : vector<8x256xf32>
    %7 = tpu.matmul %5, %6, %cst_8 {dimension_numbers = #tpu.dot_dimension_numbers<[1], [0], [0], [1], [0, 0, 1, 1], [], []>} : vector<8x64xf32>, vector<64x256xf32>, vector<8x256xf32> -> vector<8x256xf32>
    %c0_9 = arith.constant 0 : index
    %c128 = arith.constant 128 : index
    %8 = vector.load %arg10[%c0_9, %c128] : memref<12x512xf32, #tpu.memory_space<vmem>>, vector<8x256xf32>
    tpu.vector_store %arg10[%c0_9, %c128], %7 {strides = array<i32>} : memref<12x512xf32, #tpu.memory_space<vmem>>, vector<8x256xf32>,
    %c0_10 = arith.constant 0 : index
    %c0_11 = arith.constant 0 : index
    %c0_12 = arith.constant 0 : index
    %9 = vector.load %arg2[%c0_10, %c0_11, %c0_12] : memref<1x4x256xf32, #tpu.memory_space<vmem>>, vector<1x4x256xf32>
    %10 = vector.shape_cast %9 : vector<1x4x256xf32> to vector<4x256xf32>
    %c8 = arith.constant 8 : index
    %c128_13 = arith.constant 128 : index
    %11 = vector.load %arg10[%c8, %c128_13] : memref<12x512xf32, #tpu.memory_space<vmem>>, vector<4x256xf32>
    tpu.vector_store %arg10[%c8, %c128_13], %10 {strides = array<i32>} : memref<12x512xf32, #tpu.memory_space<vmem>>, vector<4x256xf32>,
    %c0_14 = arith.constant 0 : index
    %c0_15 = arith.constant 0 : index
    %c0_16 = arith.constant 0 : index
    %12 = vector.load %arg5[%c0_14, %c0_15, %c0_16] : memref<9x4x12xf32, #tpu.memory_space<vmem>>, vector<9x4x12xf32>
    %c0_17 = arith.constant 0 : index
    %c0_18 = arith.constant 0 : index
    %13 = vector.load %arg4[%c0_17, %c0_18] : memref<2x256xf32, #tpu.memory_space<vmem>>, vector<1x256xf32>
    %c1 = arith.constant 1 : index
    %c0_19 = arith.constant 0 : index
    %14 = vector.load %arg4[%c1, %c0_19] : memref<2x256xf32, #tpu.memory_space<vmem>>, vector<1x256xf32>
    %c0_20 = arith.constant 0 : index
    %c111 = arith.constant 111 : index
    %15 = vector.load %arg10[%c0_20, %c111] : memref<12x512xf32, #tpu.memory_space<vmem>>, vector<12x256xf32>
    %16 = vector.broadcast %13 : vector<1x256xf32> to vector<12x256xf32>
    %17 = arith.mulf %15, %16 : vector<12x256xf32>
    %18 = vector.extract_strided_slice %12 {offsets = [0, 0, 0], sizes = [1, 4, 12], strides = [1, 1, 1]} : vector<9x4x12xf32> to vector<1x4x12xf32>
    %19 = vector.shape_cast %18 : vector<1x4x12xf32> to vector<4x12xf32>
    %cst_21 = arith.constant dense<0.000000e+00> : vector<4x256xf32>
    %20 = tpu.matmul %19, %17, %cst_21 {dimension_numbers = #tpu.dot_dimension_numbers<[1], [0], [0], [1], [0, 0, 1, 1], [], []>} : vector<4x12xf32>, vector<12x256xf32>, vector<4x256xf32> -> vector<4x256xf32>
    %c0_22 = arith.constant 0 : index
    %c112 = arith.constant 112 : index
    %21 = vector.load %arg10[%c0_22, %c112] : memref<12x512xf32, #tpu.memory_space<vmem>>, vector<12x256xf32>
    %22 = vector.extract_strided_slice %12 {offsets = [1, 0, 0], sizes = [1, 4, 12], strides = [1, 1, 1]} : vector<9x4x12xf32> to vector<1x4x12xf32>
    %23 = vector.shape_cast %22 : vector<1x4x12xf32> to vector<4x12xf32>
    %cst_23 = arith.constant dense<0.000000e+00> : vector<4x256xf32>
    %24 = tpu.matmul %23, %21, %cst_23 {dimension_numbers = #tpu.dot_dimension_numbers<[1], [0], [0], [1], [0, 0, 1, 1], [], []>} : vector<4x12xf32>, vector<12x256xf32>, vector<4x256xf32> -> vector<4x256xf32>
    %25 = arith.addf %20, %24 : vector<4x256xf32>
    %c0_24 = arith.constant 0 : index
    %c113 = arith.constant 113 : index
    %26 = vector.load %arg10[%c0_24, %c113] : memref<12x512xf32, #tpu.memory_space<vmem>>, vector<12x256xf32>
    %27 = vector.broadcast %14 : vector<1x256xf32> to vector<12x256xf32>
    %28 = arith.mulf %26, %27 : vector<12x256xf32>
    %29 = vector.extract_strided_slice %12 {offsets = [2, 0, 0], sizes = [1, 4, 12], strides = [1, 1, 1]} : vector<9x4x12xf32> to vector<1x4x12xf32>
    %30 = vector.shape_cast %29 : vector<1x4x12xf32> to vector<4x12xf32>
    %cst_25 = arith.constant dense<0.000000e+00> : vector<4x256xf32>
    %31 = tpu.matmul %30, %28, %cst_25 {dimension_numbers = #tpu.dot_dimension_numbers<[1], [0], [0], [1], [0, 0, 1, 1], [], []>} : vector<4x12xf32>, vector<12x256xf32>, vector<4x256xf32> -> vector<4x256xf32>
    %32 = arith.addf %25, %31 : vector<4x256xf32>
    %c0_26 = arith.constant 0 : index
    %c127 = arith.constant 127 : index
    %33 = vector.load %arg10[%c0_26, %c127] : memref<12x512xf32, #tpu.memory_space<vmem>>, vector<12x256xf32>
    %34 = vector.broadcast %13 : vector<1x256xf32> to vector<12x256xf32>
    %35 = arith.mulf %33, %34 : vector<12x256xf32>
    %36 = vector.extract_strided_slice %12 {offsets = [3, 0, 0], sizes = [1, 4, 12], strides = [1, 1, 1]} : vector<9x4x12xf32> to vector<1x4x12xf32>
    %37 = vector.shape_cast %36 : vector<1x4x12xf32> to vector<4x12xf32>
    %cst_27 = arith.constant dense<0.000000e+00> : vector<4x256xf32>
    %38 = tpu.matmul %37, %35, %cst_27 {dimension_numbers = #tpu.dot_dimension_numbers<[1], [0], [0], [1], [0, 0, 1, 1], [], []>} : vector<4x12xf32>, vector<12x256xf32>, vector<4x256xf32> -> vector<4x256xf32>
    %39 = arith.addf %32, %38 : vector<4x256xf32>
    %c0_28 = arith.constant 0 : index
    %c128_29 = arith.constant 128 : index
    %40 = vector.load %arg10[%c0_28, %c128_29] : memref<12x512xf32, #tpu.memory_space<vmem>>, vector<12x256xf32>
    %41 = vector.extract_strided_slice %12 {offsets = [4, 0, 0], sizes = [1, 4, 12], strides = [1, 1, 1]} : vector<9x4x12xf32> to vector<1x4x12xf32>
    %42 = vector.shape_cast %41 : vector<1x4x12xf32> to vector<4x12xf32>
    %cst_30 = arith.constant dense<0.000000e+00> : vector<4x256xf32>
    %43 = tpu.matmul %42, %40, %cst_30 {dimension_numbers = #tpu.dot_dimension_numbers<[1], [0], [0], [1], [0, 0, 1, 1], [], []>} : vector<4x12xf32>, vector<12x256xf32>, vector<4x256xf32> -> vector<4x256xf32>
    %44 = arith.addf %39, %43 : vector<4x256xf32>
    %c0_31 = arith.constant 0 : index
    %c129 = arith.constant 129 : index
    %45 = vector.load %arg10[%c0_31, %c129] : memref<12x512xf32, #tpu.memory_space<vmem>>, vector<12x256xf32>
    %46 = vector.broadcast %14 : vector<1x256xf32> to vector<12x256xf32>
    %47 = arith.mulf %45, %46 : vector<12x256xf32>
    %48 = vector.extract_strided_slice %12 {offsets = [5, 0, 0], sizes = [1, 4, 12], strides = [1, 1, 1]} : vector<9x4x12xf32> to vector<1x4x12xf32>
    %49 = vector.shape_cast %48 : vector<1x4x12xf32> to vector<4x12xf32>
    %cst_32 = arith.constant dense<0.000000e+00> : vector<4x256xf32>
    %50 = tpu.matmul %49, %47, %cst_32 {dimension_numbers = #tpu.dot_dimension_numbers<[1], [0], [0], [1], [0, 0, 1, 1], [], []>} : vector<4x12xf32>, vector<12x256xf32>, vector<4x256xf32> -> vector<4x256xf32>
    %51 = arith.addf %44, %50 : vector<4x256xf32>
    %c0_33 = arith.constant 0 : index
    %c143 = arith.constant 143 : index
    %52 = vector.load %arg10[%c0_33, %c143] : memref<12x512xf32, #tpu.memory_space<vmem>>, vector<12x256xf32>
    %53 = vector.broadcast %13 : vector<1x256xf32> to vector<12x256xf32>
    %54 = arith.mulf %52, %53 : vector<12x256xf32>
    %55 = vector.extract_strided_slice %12 {offsets = [6, 0, 0], sizes = [1, 4, 12], strides = [1, 1, 1]} : vector<9x4x12xf32> to vector<1x4x12xf32>
    %56 = vector.shape_cast %55 : vector<1x4x12xf32> to vector<4x12xf32>
    %cst_34 = arith.constant dense<0.000000e+00> : vector<4x256xf32>
    %57 = tpu.matmul %56, %54, %cst_34 {dimension_numbers = #tpu.dot_dimension_numbers<[1], [0], [0], [1], [0, 0, 1, 1], [], []>} : vector<4x12xf32>, vector<12x256xf32>, vector<4x256xf32> -> vector<4x256xf32>
    %58 = arith.addf %51, %57 : vector<4x256xf32>
    %c0_35 = arith.constant 0 : index
    %c144 = arith.constant 144 : index
    %59 = vector.load %arg10[%c0_35, %c144] : memref<12x512xf32, #tpu.memory_space<vmem>>, vector<12x256xf32>
    %60 = vector.extract_strided_slice %12 {offsets = [7, 0, 0], sizes = [1, 4, 12], strides = [1, 1, 1]} : vector<9x4x12xf32> to vector<1x4x12xf32>
    %61 = vector.shape_cast %60 : vector<1x4x12xf32> to vector<4x12xf32>
    %cst_36 = arith.constant dense<0.000000e+00> : vector<4x256xf32>
    %62 = tpu.matmul %61, %59, %cst_36 {dimension_numbers = #tpu.dot_dimension_numbers<[1], [0], [0], [1], [0, 0, 1, 1], [], []>} : vector<4x12xf32>, vector<12x256xf32>, vector<4x256xf32> -> vector<4x256xf32>
    %63 = arith.addf %58, %62 : vector<4x256xf32>
    %c0_37 = arith.constant 0 : index
    %c145 = arith.constant 145 : index
    %64 = vector.load %arg10[%c0_37, %c145] : memref<12x512xf32, #tpu.memory_space<vmem>>, vector<12x256xf32>
    %65 = vector.broadcast %14 : vector<1x256xf32> to vector<12x256xf32>
    %66 = arith.mulf %64, %65 : vector<12x256xf32>
    %67 = vector.extract_strided_slice %12 {offsets = [8, 0, 0], sizes = [1, 4, 12], strides = [1, 1, 1]} : vector<9x4x12xf32> to vector<1x4x12xf32>
    %68 = vector.shape_cast %67 : vector<1x4x12xf32> to vector<4x12xf32>
    %cst_38 = arith.constant dense<0.000000e+00> : vector<4x256xf32>
    %69 = tpu.matmul %68, %66, %cst_38 {dimension_numbers = #tpu.dot_dimension_numbers<[1], [0], [0], [1], [0, 0, 1, 1], [], []>} : vector<4x12xf32>, vector<12x256xf32>, vector<4x256xf32> -> vector<4x256xf32>
    %70 = arith.addf %63, %69 : vector<4x256xf32>
    %c0_39 = arith.constant 0 : index
    %c0_40 = arith.constant 0 : index
    %71 = vector.load %arg6[%c0_39, %c0_40] : memref<4x1xf32, #tpu.memory_space<vmem>>, vector<4x1xf32>
    %72 = vector.broadcast %71 : vector<4x1xf32> to vector<4x256xf32>
    %73 = arith.addf %70, %72 : vector<4x256xf32>
    %74 = vector.shape_cast %73 : vector<4x256xf32> to vector<1x4x256xf32>
    %c0_41 = arith.constant 0 : index
    %c0_42 = arith.constant 0 : index
    %c0_43 = arith.constant 0 : index
    %75 = vector.load %arg7[%c0_41, %c0_42, %c0_43] : memref<1x4x256xf32, #tpu.memory_space<vmem>>, vector<1x4x256xf32>
    tpu.vector_store %arg7[%c0_41, %c0_42, %c0_43], %74 {strides = array<i32>} : memref<1x4x256xf32, #tpu.memory_space<vmem>>, vector<1x4x256xf32>,
    %cst_44 = arith.constant dense<0.000000e+00> : vector<4xf32>
    %76 = vector.multi_reduction <add>, %73, %cst_44 [1] : vector<4x256xf32> to vector<4xf32>
    %77 = vector.shape_cast %76 : vector<4xf32> to vector<4x1xf32>
    %78 = vector.shape_cast %77 : vector<4x1xf32> to vector<1x4x1xf32>
    %c0_45 = arith.constant 0 : index
    %c0_46 = arith.constant 0 : index
    %c0_47 = arith.constant 0 : index
    %79 = vector.load %arg8[%c0_45, %c0_46, %c0_47] : memref<1x4x1xf32, #tpu.memory_space<vmem>>, vector<1x4x1xf32>
    tpu.vector_store %arg8[%c0_45, %c0_46, %c0_47], %78 {strides = array<i32>} : memref<1x4x1xf32, #tpu.memory_space<vmem>>, vector<1x4x1xf32>,
    %80 = arith.mulf %73, %73 : vector<4x256xf32>
    %cst_48 = arith.constant dense<0.000000e+00> : vector<4xf32>
    %81 = vector.multi_reduction <add>, %80, %cst_48 [1] : vector<4x256xf32> to vector<4xf32>
    %82 = vector.shape_cast %81 : vector<4xf32> to vector<4x1xf32>
    %83 = vector.shape_cast %82 : vector<4x1xf32> to vector<1x4x1xf32>
    %c0_49 = arith.constant 0 : index
    %c0_50 = arith.constant 0 : index
    %c0_51 = arith.constant 0 : index
    %84 = vector.load %arg9[%c0_49, %c0_50, %c0_51] : memref<1x4x1xf32, #tpu.memory_space<vmem>>, vector<1x4x1xf32>
    tpu.vector_store %arg9[%c0_49, %c0_50, %c0_51], %83 {strides = array<i32>} : memref<1x4x1xf32, #tpu.memory_space<vmem>>, vector<1x4x1xf32>,
    return
  }
  func.func @transform_0(%arg0: i32) -> (i32, i32, i32) {
    %c0_i32 = arith.constant 0 : i32
    %c0_i32_0 = arith.constant 0 : i32
    %c0_i32_1 = arith.constant 0 : i32
    return %arg0, %c0_i32, %c0_i32_0 : i32, i32, i32
  }
  func.func @transform_1(%arg0: i32) -> (i32, i32, i32) {
    %c0_i32 = arith.constant 0 : i32
    %c0_i32_0 = arith.constant 0 : i32
    %c0_i32_1 = arith.constant 0 : i32
    return %arg0, %c0_i32, %c0_i32_0 : i32, i32, i32
  }
  func.func @transform_2(%arg0: i32) -> (i32, i32) {
    %c0_i32 = arith.constant 0 : i32
    %c0_i32_0 = arith.constant 0 : i32
    %c0_i32_1 = arith.constant 0 : i32
    return %c0_i32, %c0_i32_0 : i32, i32
  }
  func.func @transform_3(%arg0: i32) -> (i32, i32) {
    %c0_i32 = arith.constant 0 : i32
    %c0_i32_0 = arith.constant 0 : i32
    %c0_i32_1 = arith.constant 0 : i32
    return %c0_i32, %c0_i32_0 : i32, i32
  }
  func.func @transform_4(%arg0: i32) -> (i32, i32, i32) {
    %c0_i32 = arith.constant 0 : i32
    %c0_i32_0 = arith.constant 0 : i32
    %c0_i32_1 = arith.constant 0 : i32
    %c0_i32_2 = arith.constant 0 : i32
    return %c0_i32, %c0_i32_0, %c0_i32_1 : i32, i32, i32
  }
  func.func @transform_5(%arg0: i32) -> (i32, i32) {
    %c0_i32 = arith.constant 0 : i32
    %c0_i32_0 = arith.constant 0 : i32
    %c0_i32_1 = arith.constant 0 : i32
    return %c0_i32, %c0_i32_0 : i32, i32
  }
  func.func @transform_6(%arg0: i32) -> (i32, i32, i32) {
    %c0_i32 = arith.constant 0 : i32
    %c0_i32_0 = arith.constant 0 : i32
    %c0_i32_1 = arith.constant 0 : i32
    return %arg0, %c0_i32, %c0_i32_0 : i32, i32, i32
  }
  func.func @transform_7(%arg0: i32) -> (i32, i32, i32) {
    %c0_i32 = arith.constant 0 : i32
    %c0_i32_0 = arith.constant 0 : i32
    %c0_i32_1 = arith.constant 0 : i32
    return %arg0, %c0_i32, %c0_i32_0 : i32, i32, i32
  }
  func.func @transform_8(%arg0: i32) -> (i32, i32, i32) {
    %c0_i32 = arith.constant 0 : i32
    %c0_i32_0 = arith.constant 0 : i32
    %c0_i32_1 = arith.constant 0 : i32
    return %arg0, %c0_i32, %c0_i32_0 : i32, i32, i32
  }
}

</mosaic_0001>

<llo_original>
// kernel: tpu_custom_call.1
$region0: #{tpu_custom_call.1}
  #allocation0 [shape = 'u32[]', space=smem, size = 0x4, offset = 0x4, fixed_abs, tag = 'smem constant byte address 0x4 - core index']
  #allocation1 [shape = 'u32[72,128]{1,0:T(1,128)}', space=vmem, size = 0x9000, scoped, tag = 'internal scratch']
  #allocation2 [shape = 'f32[12,512]{1,0:T(8,128)}', space=vmem, size = 0x8000, scoped, tag = 'scratch operand']
  %s0 = inlined_call_operand.hbm [shape: f32[2,8,64], index: 0, kind: input, shape index: {}]
  %s1 = inlined_call_operand.hbm [shape: f32[2,4,256], index: 1, kind: input, shape index: {}]
  %s2 = inlined_call_operand.hbm [shape: f32[64,256], index: 2, kind: input, shape index: {}]
  %s3 = inlined_call_operand.vmem [shape: f32[2,256], index: 3, kind: input, shape index: {}]
  %s4 = inlined_call_operand.hbm [shape: f32[9,4,12], index: 4, kind: input, shape index: {}]
  %s5 = inlined_call_operand.vmem [shape: f32[4,1], index: 5, kind: input, shape index: {}]
  %s6 = inlined_call_operand.hbm [shape: f32[2,4,256], index: 6, kind: output, shape index: {0}]
  %s7 = inlined_call_operand.vmem [shape: f32[2,4,1], index: 7, kind: output, shape index: {1}]
  %s8 = inlined_call_operand.vmem [shape: f32[2,4,1], index: 8, kind: output, shape index: {2}]
  %9 = xla_tuple %s6, %s7, %s8
  %s10 = sld [smem:[#allocation0]]
  $region89: #{tpu_custom_call.1} parent=0
    _
  %s12 = ssub.s32 1, %s10
  %s13 = scalar_select 0, %s12, %s10
  $region1: #{tpu_custom_call.1} parent=0
    #allocation3 [shape = 'u8[8192]{0}', space=vmem, size = 0x2000, scoped, tag = 'input window, operand 0']
    #allocation4 [shape = 's32[2]{0}', space=sflag, size = 0x8, scoped, tag = 'scoped memory for tpu_custom_call.1']
    #allocation5 [shape = 's32[2]{0}', space=sflag, size = 0x8, scoped, tag = 'scoped memory for tpu_custom_call.1']
    #allocation6 [shape = 'u8[8192]{0}', space=vmem, size = 0x2000, scoped, tag = 'input window, operand 1']
    #allocation7 [shape = 's32[2]{0}', space=sflag, size = 0x8, scoped, tag = 'scoped memory for tpu_custom_call.1']
    #allocation8 [shape = 'u8[65536]{0}', space=vmem, size = 0x10000, scoped, tag = 'input window, operand 2, single buffered']
    #allocation9 [shape = 'u8[18432]{0}', space=vmem, size = 0x4800, scoped, tag = 'input window, operand 4, single buffered']
    #allocation10 [shape = 's32[1]{0}', space=sflag, size = 0x4, scoped, tag = 'scoped memory for tpu_custom_call.1']
    #allocation11 [shape = 'u8[8192]{0}', space=vmem, size = 0x2000, scoped, tag = 'output window, operand 0']
    %14 = vsyncpa [#allocation4], 0
    %s15 = scalar_lea.sflag [#allocation4], 1
    %16 = vsyncpa %s15, 0
    %17 = vsyncpa [#allocation7], 0
    %s18 = scalar_lea.sflag [#allocation7], 1
    %19 = vsyncpa %s18, 0
    %20 = vsyncpa [#allocation10], 0
    %21 = vsyncpa [#allocation5], 0
    %s22 = scalar_lea.sflag [#allocation5], 1
    %23 = vsyncpa %s22, 0
    loop: start=0, step=1, limit=4
    $region2: #{tpu_custom_call.1} parent=1 // loop_pre_header
      _
    $region3: #{tpu_custom_call.1} parent=1 // loop_header
      %s25 = sphi 0, %s29
      %p26 = scmp.ge.s32.totalorder %s25, 4
      %s35 = sphi 0, %s37
      %s38 = sphi 0, %s35
      %s39 = sphi 0, %s38
      %s55 = sphi 0, %s39
      %s61 = sphi 0, %s63
      %s64 = sphi 0, %s61
      %s65 = sphi 0, %s64
      %s81 = sphi 0, %s65
      %s85 = sphi 0, %s85
      %s87 = sphi 0, %s85
      %s88 = sphi 0, %s87
      %s102 = sphi 0, %s88
      %s106 = sphi 0, %s106
      %s108 = sphi 0, %s106
      %s109 = sphi 0, %s108
      %s123 = sphi 0, %s109
      %s127 = sphi 0, %s127
      %s129 = sphi 0, %s127
      %s130 = sphi 0, %s129
      %s144 = sphi 0, %s130
      %s148 = sphi 0, %s148
      %s150 = sphi 0, %s148
      %s151 = sphi 0, %s150
      %s165 = sphi 0, %s151
      %s171 = sphi 0, %s173
      %s174 = sphi 0, %s171
      %s175 = sphi 0, %s174
      %s191 = sphi 0, %s175
      %s197 = sphi 0, %s199
      %s200 = sphi 0, %s197
      %s201 = sphi 0, %s200
      %s217 = sphi 0, %s201
      %s223 = sphi 0, %s225
      %s226 = sphi 0, %s223
      %s227 = sphi 0, %s226
      %s243 = sphi 0, %s227
    $region4: #{tpu_custom_call.1} parent=1 // loop_header_branch
      %28 = sbr.rel (%p26) target = $region8
    $region5: #{tpu_custom_call.1} parent=1 // loop_body
      %s30 = ssub.s32 %s25, 1
      %s31 = ssub.s32 %s25, 2
      %s32 = sadd.s32 %s25, 1
      %s33 = ssub.s32 %s25, %s32
      %p34 = scmp.eq.s32.totalorder %s33, 0
      %s36 = sadd.s32 %s35, 1
      %s37 = scalar_select %p34, %s35, %s36
      %p40 = pneg %p34
      %p41 = scmp.eq.s32.totalorder %s25, 1
      %p42 = por %p40, %p41
      %p43 = scmp.ne.s32.totalorder %s35, %s38
      %p44 = scmp.eq.s32.totalorder %s25, 0
      %p45 = por %p43, %p44
      %p46 = scmp.ne.s32.totalorder %s35, %s38
      %p47 = scmp.eq.s32.totalorder %s30, 1
      %p48 = por %p46, %p47
      %p49 = scmp.ne.s32.totalorder %s38, %s39
      %p50 = scmp.eq.s32.totalorder %s30, 0
      %p51 = por %p49, %p50
      %p52 = scmp.ne.s32.totalorder %s38, %s39
      %p53 = scmp.eq.s32.totalorder %s31, 1
      %p54 = por %p52, %p53
      %p56 = scmp.ne.s32.totalorder %s39, %s55
      %p57 = scmp.eq.s32.totalorder %s31, 0
      %p58 = por %p56, %p57
      %s59 = ssub.s32 %s25, %s32
      %p60 = scmp.eq.s32.totalorder %s59, 0
      %s62 = sadd.s32 %s61, 1
      %s63 = scalar_select %p60, %s61, %s62
      %p66 = pneg %p60
      %p67 = scmp.eq.s32.totalorder %s25, 1
      %p68 = por %p66, %p67
      %p69 = scmp.ne.s32.totalorder %s61, %s64
      %p70 = scmp.eq.s32.totalorder %s25, 0
      %p71 = por %p69, %p70
      %p72 = scmp.ne.s32.totalorder %s61, %s64
      %p73 = scmp.eq.s32.totalorder %s30, 1
      %p74 = por %p72, %p73
      %p75 = scmp.ne.s32.totalorder %s64, %s65
      %p76 = scmp.eq.s32.totalorder %s30, 0
      %p77 = por %p75, %p76
      %p78 = scmp.ne.s32.totalorder %s64, %s65
      %p79 = scmp.eq.s32.totalorder %s31, 1
      %p80 = por %p78, %p79
      %p82 = scmp.ne.s32.totalorder %s65, %s81
      %p83 = scmp.eq.s32.totalorder %s31, 0
      %p84 = por %p82, %p83
      %s86 = sadd.s32 %s85, 1
      %p89 = scmp.eq.s32.totalorder %s25, 1
      %p90 = scmp.ne.s32.totalorder %s85, %s87
      %p91 = scmp.eq.s32.totalorder %s25, 0
      %p92 = por %p90, %p91
      %p93 = scmp.ne.s32.totalorder %s85, %s87
      %p94 = scmp.eq.s32.totalorder %s30, 1
      %p95 = por %p93, %p94
      %p96 = scmp.ne.s32.totalorder %s87, %s88
      %p97 = scmp.eq.s32.totalorder %s30, 0
      %p98 = por %p96, %p97
      %p99 = scmp.ne.s32.totalorder %s87, %s88
      %p100 = scmp.eq.s32.totalorder %s31, 1
      %p101 = por %p99, %p100
      %p103 = scmp.ne.s32.totalorder %s88, %s102
      %p104 = scmp.eq.s32.totalorder %s31, 0
      %p105 = por %p103, %p104
      %s107 = sadd.s32 %s106, 1
      %p110 = scmp.eq.s32.totalorder %s25, 1
      %p111 = scmp.ne.s32.totalorder %s106, %s108
      %p112 = scmp.eq.s32.totalorder %s25, 0
      %p113 = por %p111, %p112
      %p114 = scmp.ne.s32.totalorder %s106, %s108
      %p115 = scmp.eq.s32.totalorder %s30, 1
      %p116 = por %p114, %p115
      %p117 = scmp.ne.s32.totalorder %s108, %s109
      %p118 = scmp.eq.s32.totalorder %s30, 0
      %p119 = por %p117, %p118
      %p120 = scmp.ne.s32.totalorder %s108, %s109
      %p121 = scmp.eq.s32.totalorder %s31, 1
      %p122 = por %p120, %p121
      %p124 = scmp.ne.s32.totalorder %s109, %s123
      %p125 = scmp.eq.s32.totalorder %s31, 0
      %p126 = por %p124, %p125
      %s128 = sadd.s32 %s127, 1
      %p131 = scmp.eq.s32.totalorder %s25, 1
      %p132 = scmp.ne.s32.totalorder %s127, %s129
      %p133 = scmp.eq.s32.totalorder %s25, 0
      %p134 = por %p132, %p133
      %p135 = scmp.ne.s32.totalorder %s127, %s129
      %p136 = scmp.eq.s32.totalorder %s30, 1
      %p137 = por %p135, %p136
      %p138 = scmp.ne.s32.totalorder %s129, %s130
      %p139 = scmp.eq.s32.totalorder %s30, 0
      %p140 = por %p138, %p139
      %p141 = scmp.ne.s32.totalorder %s129, %s130
      %p142 = scmp.eq.s32.totalorder %s31, 1
      %p143 = por %p141, %p142
      %p145 = scmp.ne.s32.totalorder %s130, %s144
      %p146 = scmp.eq.s32.totalorder %s31, 0
      %p147 = por %p145, %p146
      %s149 = sadd.s32 %s148, 1
      %p152 = scmp.eq.s32.totalorder %s25, 1
      %p153 = scmp.ne.s32.totalorder %s148, %s150
      %p154 = scmp.eq.s32.totalorder %s25, 0
      %p155 = por %p153, %p154
      %p156 = scmp.ne.s32.totalorder %s148, %s150
      %p157 = scmp.eq.s32.totalorder %s30, 1
      %p158 = por %p156, %p157
      %p159 = scmp.ne.s32.totalorder %s150, %s151
      %p160 = scmp.eq.s32.totalorder %s30, 0
      %p161 = por %p159, %p160
      %p162 = scmp.ne.s32.totalorder %s150, %s151
      %p163 = scmp.eq.s32.totalorder %s31, 1
      %p164 = por %p162, %p163
      %p166 = scmp.ne.s32.totalorder %s151, %s165
      %p167 = scmp.eq.s32.totalorder %s31, 0
      %p168 = por %p166, %p167
      %s169 = ssub.s32 %s25, %s32
      %p170 = scmp.eq.s32.totalorder %s169, 0
      %s172 = sadd.s32 %s171, 1
      %s173 = scalar_select %p170, %s171, %s172
      %p176 = pneg %p170
      %p177 = scmp.eq.s32.totalorder %s25, 1
      %p178 = por %p176, %p177
      %p179 = scmp.ne.s32.totalorder %s171, %s174
      %p180 = scmp.eq.s32.totalorder %s25, 0
      %p181 = por %p179, %p180
      %p182 = scmp.ne.s32.totalorder %s171, %s174
      %p183 = scmp.eq.s32.totalorder %s30, 1
      %p184 = por %p182, %p183
      %p185 = scmp.ne.s32.totalorder %s174, %s175
      %p186 = scmp.eq.s32.totalorder %s30, 0
      %p187 = por %p185, %p186
      %p188 = scmp.ne.s32.totalorder %s174, %s175
      %p189 = scmp.eq.s32.totalorder %s31, 1
      %p190 = por %p188, %p189
      %p192 = scmp.ne.s32.totalorder %s175, %s191
      %p193 = scmp.eq.s32.totalorder %s31, 0
      %p194 = por %p192, %p193
      %s195 = ssub.s32 %s25, %s32
      %p196 = scmp.eq.s32.totalorder %s195, 0
      %s198 = sadd.s32 %s197, 1
      %s199 = scalar_select %p196, %s197, %s198
      %p202 = pneg %p196
      %p203 = scmp.eq.s32.totalorder %s25, 1
      %p204 = por %p202, %p203
      %p205 = scmp.ne.s32.totalorder %s197, %s200
      %p206 = scmp.eq.s32.totalorder %s25, 0
      %p207 = por %p205, %p206
      %p208 = scmp.ne.s32.totalorder %s197, %s200
      %p209 = scmp.eq.s32.totalorder %s30, 1
      %p210 = por %p208, %p209
      %p211 = scmp.ne.s32.totalorder %s200, %s201
      %p212 = scmp.eq.s32.totalorder %s30, 0
      %p213 = por %p211, %p212
      %p214 = scmp.ne.s32.totalorder %s200, %s201
      %p215 = scmp.eq.s32.totalorder %s31, 1
      %p216 = por %p214, %p215
      %p218 = scmp.ne.s32.totalorder %s201, %s217
      %p219 = scmp.eq.s32.totalorder %s31, 0
      %p220 = por %p218, %p219
      %s221 = ssub.s32 %s25, %s32
      %p222 = scmp.eq.s32.totalorder %s221, 0
      %s224 = sadd.s32 %s223, 1
      %s225 = scalar_select %p222, %s223, %s224
      %p228 = pneg %p222
      %p229 = scmp.eq.s32.totalorder %s25, 1
      %p230 = por %p228, %p229
      %p231 = scmp.ne.s32.totalorder %s223, %s226
      %p232 = scmp.eq.s32.totalorder %s25, 0
      %p233 = por %p231, %p232
      %p234 = scmp.ne.s32.totalorder %s223, %s226
      %p235 = scmp.eq.s32.totalorder %s30, 1
      %p236 = por %p234, %p235
      %p237 = scmp.ne.s32.totalorder %s226, %s227
      %p238 = scmp.eq.s32.totalorder %s30, 0
      %p239 = por %p237, %p238
      %p240 = scmp.ne.s32.totalorder %s226, %s227
      %p241 = scmp.eq.s32.totalorder %s31, 1
      %p242 = por %p240, %p241
      %p244 = scmp.ne.s32.totalorder %s227, %s243
      %p245 = scmp.eq.s32.totalorder %s31, 0
      %p246 = por %p244, %p245
      %p247 = scmp.le.s32.totalorder 1, %s25
      %p248 = scmp.lt.s32.totalorder %s25, 3
      %p249 = pnand %p247, %p248
      %p250 = pneg %p249
      // Predicated region
      $region9: #{tpu_custom_call.1} parent=5 // pred_check
        _
      $region10: #{tpu_custom_call.1} parent=5 // pred_check_branch
        %252 = sbr.rel (%p249) target = $region12
      $region11: #{tpu_custom_call.1} parent=5 // pred_region
        %s253 = ssub.s32 %s25, 1
        // Predicated region
        $region13: #{tpu_custom_call.1} parent=11 // pred_check
          %p254 = pneg %p98
        $region14: #{tpu_custom_call.1} parent=11 // pred_check_branch
          %256 = sbr.rel (%p254) target = $region16
        $region15: #{tpu_custom_call.1} parent=11 // pred_region
          %258 = vsyncadd [#allocation7], 0
          %s259 = sshll.u32 %s2, 4
          %s260 = int_to_ptr.hbm [resolvable:$true] %s259
          %s261 = sshll.u32 [#allocation8], 4
          %s262 = int_to_ptr.vmem [resolvable:$true] %s261
          %267 = dma.hbm_to_vmem [thread:$0]  %s260, 2048, %s262, [#allocation7], 256, 256, 16
        $region16: #{tpu_custom_call.1} parent=11 // pred_fallthru
          _
        // Predicated region
        $region17: #{tpu_custom_call.1} parent=11 // pred_check
          %p268 = pneg %p119
        $region18: #{tpu_custom_call.1} parent=11 // pred_check_branch
          %270 = sbr.rel (%p268) target = $region20
        $region19: #{tpu_custom_call.1} parent=11 // pred_region
          _
        $region20: #{tpu_custom_call.1} parent=11 // pred_fallthru
          _
        // Predicated region
        $region21: #{tpu_custom_call.1} parent=11 // pred_check
          %p271 = pneg %p140
        $region22: #{tpu_custom_call.1} parent=11 // pred_check_branch
          %273 = sbr.rel (%p271) target = $region24
        $region23: #{tpu_custom_call.1} parent=11 // pred_region
          %275 = vsyncadd [#allocation10], 0
          %s276 = sshll.u32 %s4, 4
          %s277 = int_to_ptr.hbm [resolvable:$true] %s276
          %s278 = sshll.u32 [#allocation9], 4
          %s279 = int_to_ptr.vmem [resolvable:$true] %s278
          %284 = dma.hbm_to_vmem [thread:$0]  %s277, 576, %s279, [#allocation10], 64, 64, 4
        $region24: #{tpu_custom_call.1} parent=11 // pred_fallthru
          _
        // Predicated region
        $region25: #{tpu_custom_call.1} parent=11 // pred_check
          %p285 = pneg %p161
        $region26: #{tpu_custom_call.1} parent=11 // pred_check_branch
          %287 = sbr.rel (%p285) target = $region28
        $region27: #{tpu_custom_call.1} parent=11 // pred_region
          _
        $region28: #{tpu_custom_call.1} parent=11 // pred_fallthru
          _
      $region12: #{tpu_custom_call.1} parent=5 // pred_fallthru
        _
      %p288 = scmp.lt.s32.totalorder %s25, 2
      // Predicated region
      $region29: #{tpu_custom_call.1} parent=5 // pred_check
        %p289 = pneg %p288
      $region30: #{tpu_custom_call.1} parent=5 // pred_check_branch
        %291 = sbr.rel (%p289) target = $region32
      $region31: #{tpu_custom_call.1} parent=5 // pred_region
        // Predicated region
        $region33: #{tpu_custom_call.1} parent=31 // pred_check
          %p292 = pneg %p45
        $region34: #{tpu_custom_call.1} parent=31 // pred_check_branch
          %294 = sbr.rel (%p292) target = $region36
        $region35: #{tpu_custom_call.1} parent=31 // pred_region
          %s295 = sand.u32 %s35, 1
          %s296 = scalar_lea.sflag [#allocation4], %s295
          %s297 = sand.u32 %s35, 1
          %s298 = smul.addr %s297, 8
          %s299 = scalar_lea.vmem [#allocation3], %s298
          %301 = vsyncadd %s296, 0
          %s302 = smul.addr %s25, 8
          %s303 = scalar_lea.hbm %s0, %s302
          %s305 = sshll.u32 %s303, 4
          %s306 = int_to_ptr.hbm [resolvable:$true] %s305
          %s307 = sshll.u32 %s299, 4
          %s308 = int_to_ptr.vmem [resolvable:$true] %s307
          %310 = dma.hbm_to_vmem [thread:$0]  %s306, 128, %s308, %s296
        $region36: #{tpu_custom_call.1} parent=31 // pred_fallthru
          _
        // Predicated region
        $region37: #{tpu_custom_call.1} parent=31 // pred_check
          %p311 = pneg %p71
        $region38: #{tpu_custom_call.1} parent=31 // pred_check_branch
          %313 = sbr.rel (%p311) target = $region40
        $region39: #{tpu_custom_call.1} parent=31 // pred_region
          %s314 = sand.u32 %s25, 1
          %s315 = scalar_lea.sflag [#allocation7], %s314
          %s316 = sand.u32 %s61, 1
          %s317 = smul.addr %s316, 8
          %s318 = scalar_lea.vmem [#allocation6], %s317
          %320 = vsyncadd %s315, 0
          %s321 = smul.addr %s25, 2
          %s322 = smul.addr %s321, 4
          %s323 = scalar_lea.hbm %s1, %s322
          %s325 = sshll.u32 %s323, 4
          %s326 = int_to_ptr.hbm [resolvable:$true] %s325
          %s327 = sshll.u32 %s318, 4
          %s328 = int_to_ptr.vmem [resolvable:$true] %s327
          %330 = dma.hbm_to_vmem [thread:$0]  %s326, 128, %s328, %s315
        $region40: #{tpu_custom_call.1} parent=31 // pred_fallthru
          _
      $region32: #{tpu_custom_call.1} parent=5 // pred_fallthru
        _
      %p331 = scmp.le.s32.totalorder 1, %s25
      %p332 = scmp.lt.s32.totalorder %s25, 3
      %p333 = pnand %p331, %p332
      %p334 = pneg %p333
      // Predicated region
      $region41: #{tpu_custom_call.1} parent=5 // pred_check
        _
      $region42: #{tpu_custom_call.1} parent=5 // pred_check_branch
        %336 = sbr.rel (%p333) target = $region44
      $region43: #{tpu_custom_call.1} parent=5 // pred_region
        %s337 = ssub.s32 %s25, 1
        %s338 = sand.u32 %s38, 1
        %s339 = scalar_lea.sflag [#allocation4], %s338
        %s340 = sand.u32 %s38, 1
        %s341 = smul.addr %s340, 8
        %s342 = scalar_lea.vmem [#allocation3], %s341
        // Predicated region
        $region45: #{tpu_custom_call.1} parent=43 // pred_check
          %p343 = pneg %p51
        $region46: #{tpu_custom_call.1} parent=43 // pred_check_branch
          %345 = sbr.rel (%p343) target = $region48
        $region47: #{tpu_custom_call.1} parent=43 // pred_region
          %347 = dma.done %s339, 128
        $region48: #{tpu_custom_call.1} parent=43 // pred_fallthru
          _
        %s348 = sand.u32 %s30, 1
        %s349 = scalar_lea.sflag [#allocation7], %s348
        %s350 = sand.u32 %s64, 1
        %s351 = smul.addr %s350, 8
        %s352 = scalar_lea.vmem [#allocation6], %s351
        // Predicated region
        $region49: #{tpu_custom_call.1} parent=43 // pred_check
          %p353 = pneg %p77
        $region50: #{tpu_custom_call.1} parent=43 // pred_check_branch
          %355 = sbr.rel (%p353) target = $region52
        $region51: #{tpu_custom_call.1} parent=43 // pred_region
          %357 = dma.done %s349, 128
        $region52: #{tpu_custom_call.1} parent=43 // pred_fallthru
          _
        // Predicated region
        $region53: #{tpu_custom_call.1} parent=43 // pred_check
          %p358 = pneg %p98
        $region54: #{tpu_custom_call.1} parent=43 // pred_check_branch
          %360 = sbr.rel (%p358) target = $region56
        $region55: #{tpu_custom_call.1} parent=43 // pred_region
          %362 = dma.done [#allocation7], 2048
        $region56: #{tpu_custom_call.1} parent=43 // pred_fallthru
          _
        // Predicated region
        $region57: #{tpu_custom_call.1} parent=43 // pred_check
          %p363 = pneg %p140
        $region58: #{tpu_custom_call.1} parent=43 // pred_check_branch
          %365 = sbr.rel (%p363) target = $region60
        $region59: #{tpu_custom_call.1} parent=43 // pred_region
          %367 = dma.done [#allocation10], 576
        $region60: #{tpu_custom_call.1} parent=43 // pred_fallthru
          _
        %s368 = sand.u32 %s38, 1
        %s369 = scalar_lea.sflag [#allocation4], %s368
        %s370 = sand.u32 %s38, 1
        %s371 = smul.addr %s370, 8
        %s372 = scalar_lea.vmem [#allocation3], %s371
        %p373 = pneg %p51
        %p374 = pneg %p48
        %s375 = sand.u32 %s30, 1
        %s376 = scalar_lea.sflag [#allocation7], %s375
        %s377 = sand.u32 %s64, 1
        %s378 = smul.addr %s377, 8
        %s379 = scalar_lea.vmem [#allocation6], %s378
        %p380 = pneg %p77
        %p381 = pneg %p74
        %p382 = pneg %p98
        %p383 = pneg %p95
        %p384 = pneg %p119
        %p385 = pneg %p116
        %p386 = pneg %p140
        %p387 = pneg %p137
        %p388 = pneg %p161
        %p389 = pneg %p158
        %p390 = pneg %p187
        %p391 = pneg %p184
        %s392 = sand.u32 %s174, 1
        %s393 = scalar_lea.sflag [#allocation5], %s392
        %s394 = sand.u32 %s174, 1
        %s395 = smul.addr %s394, 8
        %s396 = scalar_lea.vmem [#allocation11], %s395
        %p397 = pneg %p213
        %p398 = pneg %p210
        %p399 = scmp.lt.s32.totalorder %s30, 1
        %s400 = scalar_select %p399, %s30, 1
        %s401 = smul.addr %s400, 4
        %s402 = scalar_lea.vmem %s7, %s401
        %p403 = pneg %p239
        %p404 = pneg %p236
        %p405 = scmp.lt.s32.totalorder %s30, 1
        %s406 = scalar_select %p405, %s30, 1
        %s407 = smul.addr %s406, 4
        %s408 = scalar_lea.vmem %s8, %s407
        %p409 = scmp.lt.s32.totalorder %s30, 1
        %s410 = scalar_select %p409, %s30, 1
        %s411 = smul.addr %s410, 4
        %s412 = scalar_lea.vmem %s7, %s411
        %p413 = scmp.lt.s32.totalorder %s30, 1
        %s414 = scalar_select %p413, %s30, 1
        %s415 = smul.addr %s414, 4
        %s416 = scalar_lea.vmem %s8, %s415
        %417 = vst [vmem:[#allocation2] sm:$0xff] 0.0
        %418 = vst [vmem:[#allocation2 + $0x20] sm:$0xf] 0.0
        %419 = vst [vmem:[#allocation2 + $0x18] sm:$0xff] 0.0
        %420 = vst [vmem:[#allocation2 + $0x38] sm:$0xf] 0.0
        %v421 = vld [vmem:[%s342] sm:$0xff]
        %v422 = vld [vmem:[#allocation8] sm:$0xff]
        %v423 = vld [vmem:[#allocation8 + $0x8] sm:$0xff]
        %v424 = vld [vmem:[#allocation8 + $0x10] sm:$0xff]
        %v425 = vld [vmem:[#allocation8 + $0x18] sm:$0xff]
        %v426 = vld [vmem:[#allocation8 + $0x20] sm:$0xff]
        %v427 = vld [vmem:[#allocation8 + $0x28] sm:$0xff]
        %v428 = vld [vmem:[#allocation8 + $0x30] sm:$0xff]
        %v429 = vld [vmem:[#allocation8 + $0x38] sm:$0xff]
        %v430 = vld [vmem:[#allocation8 + $0x40] sm:$0xff]
        %v431 = vld [vmem:[#allocation8 + $0x48] sm:$0xff]
        %v432 = vld [vmem:[#allocation8 + $0x50] sm:$0xff]
        %v433 = vld [vmem:[#allocation8 + $0x58] sm:$0xff]
        %v434 = vld [vmem:[#allocation8 + $0x60] sm:$0xff]
        %v435 = vld [vmem:[#allocation8 + $0x68] sm:$0xff]
        %v436 = vld [vmem:[#allocation8 + $0x70] sm:$0xff]
        %v437 = vld [vmem:[#allocation8 + $0x78] sm:$0xff]
        %vm438 = vcmask 523264
        %v440 = vsel %vm438, %v421, 0
        %442 = vmatpush.msra.mxu0 0.0
        %443 = vmatpush.msra.mxu0 0.0
        %444 = vmatpush.msra.mxu0 0.0
        %445 = vmatpush.msra.mxu0 0.0
        %446 = vmatpush.msra.mxu0 0.0
        %447 = vmatpush.msra.mxu0 0.0
        %448 = vmatpush.msra.mxu0 0.0
        %449 = vmatpush.msra.mxu0 0.0
        %450 = vmatpush.msra.mxu0 %v436
        %451 = vmatpush.msra.mxu0 %v434
        %452 = vmatpush.msra.mxu0 %v432
        %453 = vmatpush.msra.mxu0 %v430
        %454 = vmatpush.msra.mxu0 %v428
        %455 = vmatpush.msra.mxu0 %v426
        %456 = vmatpush.msra.mxu0 %v424
        %457 = vmatpush.msra.mxu0 %v422
        %458 = vmatmul.f32.gmra.mxu0 %v440
        %v459 = vpop.f32.mrf.mxu0
        %v460 = vadd.f32 0.0, %v459
        %461 = vdwg.mxu0
        %462 = vmatpush.msra.mxu0 0.0
        %463 = vmatpush.msra.mxu0 0.0
        %464 = vmatpush.msra.mxu0 0.0
        %465 = vmatpush.msra.mxu0 0.0
        %466 = vmatpush.msra.mxu0 0.0
        %467 = vmatpush.msra.mxu0 0.0
        %468 = vmatpush.msra.mxu0 0.0
        %469 = vmatpush.msra.mxu0 0.0
        %470 = vmatpush.msra.mxu0 %v437
        %471 = vmatpush.msra.mxu0 %v435
        %472 = vmatpush.msra.mxu0 %v433
        %473 = vmatpush.msra.mxu0 %v431
        %474 = vmatpush.msra.mxu0 %v429
        %475 = vmatpush.msra.mxu0 %v427
        %476 = vmatpush.msra.mxu0 %v425
        %477 = vmatpush.msra.mxu0 %v423
        %478 = vmatmul.f32.gmra.mxu0 %v440
        %v479 = vpop.f32.mrf.mxu0
        %v480 = vadd.f32 0.0, %v479
        %481 = vdwg.mxu0
        %482 = vst [vmem:[#allocation2 + $0x8] sm:$0xff] %v460
        %483 = vst [vmem:[#allocation2 + $0x10] sm:$0xff] %v480
        %v484 = vld [vmem:[%s352] sm:$0xff]
        %486 = vst [vmem:[#allocation1] ss:$2 sm:$0xff] %v484
        %v487 = vld.sshfl [vmem:[#allocation1] sm:$0xff pattern:$0x75316420]
        %v488 = vld.sshfl [vmem:[#allocation1 + $0x8] sm:$0xff pattern:$0x75316420]
        %491 = vst [vmem:[#allocation2 + $0x28] sm:$0xf] %v487
        %492 = vst [vmem:[#allocation2 + $0x30] sm:$0xf] %v488
        %v493 = vld [vmem:[#allocation9] sm:$0xf]
        %v494 = vld [vmem:[#allocation9 + $0x4] sm:$0xf]
        %v495 = vld [vmem:[#allocation9 + $0x8] sm:$0xf]
        %v496 = vld [vmem:[#allocation9 + $0xc] sm:$0xf]
        %v497 = vld [vmem:[#allocation9 + $0x10] sm:$0xf]
        %v498 = vld [vmem:[#allocation9 + $0x14] sm:$0xf]
        %v499 = vld [vmem:[#allocation9 + $0x18] sm:$0xf]
        %v500 = vld [vmem:[#allocation9 + $0x1c] sm:$0xf]
        %v501 = vld [vmem:[#allocation9 + $0x20] sm:$0xf]
        %v502 = vld [vmem:[%s3] ss:$2 sm:$0x3]
        %s503 = scalar_lea.vmem %s3, 1
        %v504 = vld [vmem:[%s503] ss:$2 sm:$0x3]
        %v505 = vld [vmem:[#allocation2] sm:$0xff]
        %v506 = vld [vmem:[#allocation2 + $0x8] sm:$0xff]
        %v507 = vld [vmem:[#allocation2 + $0x10] sm:$0xff]
        %v508 = vld [vmem:[#allocation2 + $0x20] sm:$0xf]
        %v509 = vld [vmem:[#allocation2 + $0x28] sm:$0xf]
        %v510 = vld [vmem:[#allocation2 + $0x30] sm:$0xf]
        %v512 = vperm.slane %v502, 0
        %v513 = vperm.slane %v502, 1
        %514 = vrot.lane.b32.xlu0 %v512, 111
        %v515 = vpop.permute.xlu0 %514
        %516 = vrot.lane.b32.xlu0 %v513, 111
        %v517 = vpop.permute.xlu0 %516
        %vm518 = vcmask 908288
        %v519 = vsel %vm518, %v515, %v517
        %v523 = vmul.f32 %v505, %v515
        %v524 = vmul.f32 %v506, %v519
        %v525 = vmul.f32 %v507, %v517
        %v526 = vmul.f32 %v508, %v515
        %v527 = vmul.f32 %v509, %v519
        %v528 = vmul.f32 %v510, %v517
        %535 = vrot.lane.b32.xlu0 %v505, 16
        %v536 = vpop.permute.xlu0 %535
        %537 = vrot.lane.b32.xlu0 %v506, 16
        %v538 = vpop.permute.xlu0 %537
        %539 = vrot.lane.b32.xlu0 %v507, 16
        %v540 = vpop.permute.xlu0 %539
        %541 = vrot.lane.b32.xlu0 %v508, 16
        %v542 = vpop.permute.xlu0 %541
        %543 = vrot.lane.b32.xlu0 %v509, 16
        %v544 = vpop.permute.xlu0 %543
        %545 = vrot.lane.b32.xlu0 %v510, 16
        %v546 = vpop.permute.xlu0 %545
        %vm547 = vcmask 130048
        %v548 = vsel %vm547, %v536, %v538
        %v549 = vsel %vm547, %v538, %v540
        %v550 = vsel %vm547, %v542, %v544
        %v551 = vsel %vm547, %v544, %v546
        %vm554 = vcmask 97280
        %v556 = vsel %vm554, %v494, 0
        %vm558 = vcmask 1043456
        %v559 = vsel %vm558, %v550, 0
        %v561 = vsel %vm558, %v551, 0
        %563 = vmatpush.msra.mxu0 0.0
        %564 = vmatpush.msra.mxu0 0.0
        %565 = vmatpush.msra.mxu0 0.0
        %566 = vmatpush.msra.mxu0 0.0
        %567 = vmatpush.msra.mxu0 0.0
        %568 = vmatpush.msra.mxu0 0.0
        %569 = vmatpush.msra.mxu0 0.0
        %570 = vmatpush.msra.mxu0 0.0
        %571 = vmatpush.msra.mxu0 0.0
        %572 = vmatpush.msra.mxu0 0.0
        %573 = vmatpush.msra.mxu0 0.0
        %574 = vmatpush.msra.mxu0 0.0
        %575 = vmatpush.msra.mxu0 0.0
        %576 = vmatpush.msra.mxu0 0.0
        %577 = vmatpush.msra.mxu0 %v559
        %578 = vmatpush.msra.mxu0 %v548
        %579 = vmatmul.f32.gmra.mxu0 %v556
        %v580 = vpop.f32.mrf.mxu0
        %v581 = vadd.f32 0.0, %v580
        %582 = vdwg.mxu0
        %583 = vmatpush.msra.mxu0 0.0
        %584 = vmatpush.msra.mxu0 0.0
        %585 = vmatpush.msra.mxu0 0.0
        %586 = vmatpush.msra.mxu0 0.0
        %587 = vmatpush.msra.mxu0 0.0
        %588 = vmatpush.msra.mxu0 0.0
        %589 = vmatpush.msra.mxu0 0.0
        %590 = vmatpush.msra.mxu0 0.0
        %591 = vmatpush.msra.mxu0 0.0
        %592 = vmatpush.msra.mxu0 0.0
        %593 = vmatpush.msra.mxu0 0.0
        %594 = vmatpush.msra.mxu0 0.0
        %595 = vmatpush.msra.mxu0 0.0
        %596 = vmatpush.msra.mxu0 0.0
        %597 = vmatpush.msra.mxu0 %v561
        %598 = vmatpush.msra.mxu0 %v549
        %599 = vmatmul.f32.gmra.mxu0 %v556
        %v600 = vpop.f32.mrf.mxu0
        %v601 = vadd.f32 0.0, %v600
        %602 = vdwg.mxu0
        %609 = vrot.lane.b32.xlu0 %v523, 17
        %v610 = vpop.permute.xlu0 %609
        %611 = vrot.lane.b32.xlu0 %v524, 17
        %v612 = vpop.permute.xlu0 %611
        %613 = vrot.lane.b32.xlu0 %v525, 17
        %v614 = vpop.permute.xlu0 %613
        %615 = vrot.lane.b32.xlu0 %v526, 17
        %v616 = vpop.permute.xlu0 %615
        %617 = vrot.lane.b32.xlu0 %v527, 17
        %v618 = vpop.permute.xlu0 %617
        %619 = vrot.lane.b32.xlu0 %v528, 17
        %v620 = vpop.permute.xlu0 %619
        %vm621 = vcmask 138240
        %v622 = vsel %vm621, %v610, %v612
        %v623 = vsel %vm621, %v612, %v614
        %v624 = vsel %vm621, %v616, %v618
        %v625 = vsel %vm621, %v618, %v620
        %v629 = vsel %vm554, %v493, 0
        %v631 = vsel %vm558, %v624, 0
        %v633 = vsel %vm558, %v625, 0
        %635 = vmatpush.msra.mxu0 0.0
        %636 = vmatpush.msra.mxu0 0.0
        %637 = vmatpush.msra.mxu0 0.0
        %638 = vmatpush.msra.mxu0 0.0
        %639 = vmatpush.msra.mxu0 0.0
        %640 = vmatpush.msra.mxu0 0.0
        %641 = vmatpush.msra.mxu0 0.0
        %642 = vmatpush.msra.mxu0 0.0
        %643 = vmatpush.msra.mxu0 0.0
        %644 = vmatpush.msra.mxu0 0.0
        %645 = vmatpush.msra.mxu0 0.0
        %646 = vmatpush.msra.mxu0 0.0
        %647 = vmatpush.msra.mxu0 0.0
        %648 = vmatpush.msra.mxu0 0.0
        %649 = vmatpush.msra.mxu0 %v631
        %650 = vmatpush.msra.mxu0 %v622
        %651 = vmatmul.f32.gmra.mxu0 %v629
        %v652 = vpop.f32.mrf.mxu0
        %v653 = vadd.f32 %v581, %v652
        %654 = vdwg.mxu0
        %655 = vmatpush.msra.mxu0 0.0
        %656 = vmatpush.msra.mxu0 0.0
        %657 = vmatpush.msra.mxu0 0.0
        %658 = vmatpush.msra.mxu0 0.0
        %659 = vmatpush.msra.mxu0 0.0
        %660 = vmatpush.msra.mxu0 0.0
        %661 = vmatpush.msra.mxu0 0.0
        %662 = vmatpush.msra.mxu0 0.0
        %663 = vmatpush.msra.mxu0 0.0
        %664 = vmatpush.msra.mxu0 0.0
        %665 = vmatpush.msra.mxu0 0.0
        %666 = vmatpush.msra.mxu0 0.0
        %667 = vmatpush.msra.mxu0 0.0
        %668 = vmatpush.msra.mxu0 0.0
        %669 = vmatpush.msra.mxu0 %v633
        %670 = vmatpush.msra.mxu0 %v623
        %671 = vmatmul.f32.gmra.mxu0 %v629
        %v672 = vpop.f32.mrf.mxu0
        %v673 = vadd.f32 %v601, %v672
        %674 = vdwg.mxu0
        %v676 = vperm.slane %v504, 0
        %v677 = vperm.slane %v504, 1
        %678 = vrot.lane.b32.xlu0 %v676, 113
        %v679 = vpop.permute.xlu0 %678
        %680 = vrot.lane.b32.xlu0 %v677, 113
        %v681 = vpop.permute.xlu0 %680
        %vm682 = vcmask 924672
        %v683 = vsel %vm682, %v679, %v681
        %v687 = vmul.f32 %v505, %v679
        %v688 = vmul.f32 %v506, %v683
        %v689 = vmul.f32 %v507, %v681
        %v690 = vmul.f32 %v508, %v679
        %v691 = vmul.f32 %v509, %v683
        %v692 = vmul.f32 %v510, %v681
        %699 = vrot.lane.b32.xlu0 %v687, 15
        %v700 = vpop.permute.xlu0 %699
        %701 = vrot.lane.b32.xlu0 %v688, 15
        %v702 = vpop.permute.xlu0 %701
        %703 = vrot.lane.b32.xlu0 %v689, 15
        %v704 = vpop.permute.xlu0 %703
        %705 = vrot.lane.b32.xlu0 %v690, 15
        %v706 = vpop.permute.xlu0 %705
        %707 = vrot.lane.b32.xlu0 %v691, 15
        %v708 = vpop.permute.xlu0 %707
        %709 = vrot.lane.b32.xlu0 %v692, 15
        %v710 = vpop.permute.xlu0 %709
        %vm711 = vcmask 121856
        %v712 = vsel %vm711, %v700, %v702
        %v713 = vsel %vm711, %v702, %v704
        %v714 = vsel %vm711, %v706, %v708
        %v715 = vsel %vm711, %v708, %v710
        %v719 = vsel %vm554, %v495, 0
        %v721 = vsel %vm558, %v714, 0
        %v723 = vsel %vm558, %v715, 0
        %725 = vmatpush.msra.mxu0 0.0
        %726 = vmatpush.msra.mxu0 0.0
        %727 = vmatpush.msra.mxu0 0.0
        %728 = vmatpush.msra.mxu0 0.0
        %729 = vmatpush.msra.mxu0 0.0
        %730 = vmatpush.msra.mxu0 0.0
        %731 = vmatpush.msra.mxu0 0.0
        %732 = vmatpush.msra.mxu0 0.0
        %733 = vmatpush.msra.mxu0 0.0
        %734 = vmatpush.msra.mxu0 0.0
        %735 = vmatpush.msra.mxu0 0.0
        %736 = vmatpush.msra.mxu0 0.0
        %737 = vmatpush.msra.mxu0 0.0
        %738 = vmatpush.msra.mxu0 0.0
        %739 = vmatpush.msra.mxu0 %v721
        %740 = vmatpush.msra.mxu0 %v712
        %741 = vmatmul.f32.gmra.mxu0 %v719
        %v742 = vpop.f32.mrf.mxu0
        %v743 = vadd.f32 0.0, %v742
        %744 = vdwg.mxu0
        %745 = vmatpush.msra.mxu0 0.0
        %746 = vmatpush.msra.mxu0 0.0
        %747 = vmatpush.msra.mxu0 0.0
        %748 = vmatpush.msra.mxu0 0.0
        %749 = vmatpush.msra.mxu0 0.0
        %750 = vmatpush.msra.mxu0 0.0
        %751 = vmatpush.msra.mxu0 0.0
        %752 = vmatpush.msra.mxu0 0.0
        %753 = vmatpush.msra.mxu0 0.0
        %754 = vmatpush.msra.mxu0 0.0
        %755 = vmatpush.msra.mxu0 0.0
        %756 = vmatpush.msra.mxu0 0.0
        %757 = vmatpush.msra.mxu0 0.0
        %758 = vmatpush.msra.mxu0 0.0
        %759 = vmatpush.msra.mxu0 %v723
        %760 = vmatpush.msra.mxu0 %v713
        %761 = vmatmul.f32.gmra.mxu0 %v719
        %v762 = vpop.f32.mrf.mxu0
        %v763 = vadd.f32 0.0, %v762
        %764 = vdwg.mxu0
        %v765 = vadd.f32 %v653, %v743
        %v766 = vadd.f32 %v673, %v763
        %767 = vrot.lane.b32.xlu0 %v512, 127
        %v768 = vpop.permute.xlu0 %767
        %769 = vrot.lane.b32.xlu0 %v513, 127
        %v770 = vpop.permute.xlu0 %769
        %vm771 = vcmask 1039360
        %v772 = vsel %vm771, %v768, %v770
        %v776 = vmul.f32 %v505, %v768
        %v777 = vmul.f32 %v506, %v772
        %v778 = vmul.f32 %v507, %v770
        %v779 = vmul.f32 %v508, %v768
        %v780 = vmul.f32 %v509, %v772
        %v781 = vmul.f32 %v510, %v770
        %788 = vrot.lane.b32.xlu0 %v776, 1
        %v789 = vpop.permute.xlu0 %788
        %790 = vrot.lane.b32.xlu0 %v777, 1
        %v791 = vpop.permute.xlu0 %790
        %792 = vrot.lane.b32.xlu0 %v778, 1
        %v793 = vpop.permute.xlu0 %792
        %794 = vrot.lane.b32.xlu0 %v779, 1
        %v795 = vpop.permute.xlu0 %794
        %796 = vrot.lane.b32.xlu0 %v780, 1
        %v797 = vpop.permute.xlu0 %796
        %798 = vrot.lane.b32.xlu0 %v781, 1
        %v799 = vpop.permute.xlu0 %798
        %vm800 = vcmask 7168
        %v801 = vsel %vm800, %v789, %v791
        %v802 = vsel %vm800, %v791, %v793
        %v803 = vsel %vm800, %v795, %v797
        %v804 = vsel %vm800, %v797, %v799
        %v808 = vsel %vm554, %v496, 0
        %v810 = vsel %vm558, %v803, 0
        %v812 = vsel %vm558, %v804, 0
        %814 = vmatpush.msra.mxu0 0.0
        %815 = vmatpush.msra.mxu0 0.0
        %816 = vmatpush.msra.mxu0 0.0
        %817 = vmatpush.msra.mxu0 0.0
        %818 = vmatpush.msra.mxu0 0.0
        %819 = vmatpush.msra.mxu0 0.0
        %820 = vmatpush.msra.mxu0 0.0
        %821 = vmatpush.msra.mxu0 0.0
        %822 = vmatpush.msra.mxu0 0.0
        %823 = vmatpush.msra.mxu0 0.0
        %824 = vmatpush.msra.mxu0 0.0
        %825 = vmatpush.msra.mxu0 0.0
        %826 = vmatpush.msra.mxu0 0.0
        %827 = vmatpush.msra.mxu0 0.0
        %828 = vmatpush.msra.mxu0 %v810
        %829 = vmatpush.msra.mxu0 %v801
        %830 = vmatmul.f32.gmra.mxu0 %v808
        %v831 = vpop.f32.mrf.mxu0
        %v832 = vadd.f32 0.0, %v831
        %833 = vdwg.mxu0
        %834 = vmatpush.msra.mxu0 0.0
        %835 = vmatpush.msra.mxu0 0.0
        %836 = vmatpush.msra.mxu0 0.0
        %837 = vmatpush.msra.mxu0 0.0
        %838 = vmatpush.msra.mxu0 0.0
        %839 = vmatpush.msra.mxu0 0.0
        %840 = vmatpush.msra.mxu0 0.0
        %841 = vmatpush.msra.mxu0 0.0
        %842 = vmatpush.msra.mxu0 0.0
        %843 = vmatpush.msra.mxu0 0.0
        %844 = vmatpush.msra.mxu0 0.0
        %845 = vmatpush.msra.mxu0 0.0
        %846 = vmatpush.msra.mxu0 0.0
        %847 = vmatpush.msra.mxu0 0.0
        %848 = vmatpush.msra.mxu0 %v812
        %849 = vmatpush.msra.mxu0 %v802
        %850 = vmatmul.f32.gmra.mxu0 %v808
        %v851 = vpop.f32.mrf.mxu0
        %v852 = vadd.f32 0.0, %v851
        %853 = vdwg.mxu0
        %v854 = vadd.f32 %v765, %v832
        %v855 = vadd.f32 %v766, %v852
        %v857 = vsel %vm554, %v497, 0
        %v859 = vsel %vm558, %v509, 0
        %v861 = vsel %vm558, %v510, 0
        %863 = vmatpush.msra.mxu0 0.0
        %864 = vmatpush.msra.mxu0 0.0
        %865 = vmatpush.msra.mxu0 0.0
        %866 = vmatpush.msra.mxu0 0.0
        %867 = vmatpush.msra.mxu0 0.0
        %868 = vmatpush.msra.mxu0 0.0
        %869 = vmatpush.msra.mxu0 0.0
        %870 = vmatpush.msra.mxu0 0.0
        %871 = vmatpush.msra.mxu0 0.0
        %872 = vmatpush.msra.mxu0 0.0
        %873 = vmatpush.msra.mxu0 0.0
        %874 = vmatpush.msra.mxu0 0.0
        %875 = vmatpush.msra.mxu0 0.0
        %876 = vmatpush.msra.mxu0 0.0
        %877 = vmatpush.msra.mxu0 %v859
        %878 = vmatpush.msra.mxu0 %v506
        %879 = vmatmul.f32.gmra.mxu0 %v857
        %v880 = vpop.f32.mrf.mxu0
        %v881 = vadd.f32 0.0, %v880
        %882 = vdwg.mxu0
        %883 = vmatpush.msra.mxu0 0.0
        %884 = vmatpush.msra.mxu0 0.0
        %885 = vmatpush.msra.mxu0 0.0
        %886 = vmatpush.msra.mxu0 0.0
        %887 = vmatpush.msra.mxu0 0.0
        %888 = vmatpush.msra.mxu0 0.0
        %889 = vmatpush.msra.mxu0 0.0
        %890 = vmatpush.msra.mxu0 0.0
        %891 = vmatpush.msra.mxu0 0.0
        %892 = vmatpush.msra.mxu0 0.0
        %893 = vmatpush.msra.mxu0 0.0
        %894 = vmatpush.msra.mxu0 0.0
        %895 = vmatpush.msra.mxu0 0.0
        %896 = vmatpush.msra.mxu0 0.0
        %897 = vmatpush.msra.mxu0 %v861
        %898 = vmatpush.msra.mxu0 %v507
        %899 = vmatmul.f32.gmra.mxu0 %v857
        %v900 = vpop.f32.mrf.mxu0
        %v901 = vadd.f32 0.0, %v900
        %902 = vdwg.mxu0
        %v903 = vadd.f32 %v854, %v881
        %v904 = vadd.f32 %v855, %v901
        %v905 = vld [vmem:[#allocation2 + $0x8] sm:$0xff]
        %v906 = vld [vmem:[#allocation2 + $0x10] sm:$0xff]
        %v907 = vld [vmem:[#allocation2 + $0x18] sm:$0xff]
        %v908 = vld [vmem:[#allocation2 + $0x28] sm:$0xf]
        %v909 = vld [vmem:[#allocation2 + $0x30] sm:$0xf]
        %v910 = vld [vmem:[#allocation2 + $0x38] sm:$0xf]
        %911 = vrot.lane.b32.xlu0 %v676, 1
        %v912 = vpop.permute.xlu0 %911
        %913 = vrot.lane.b32.xlu0 %v677, 1
        %v914 = vpop.permute.xlu0 %913
        %v915 = vsel %vm800, %v912, %v914
        %v919 = vmul.f32 %v905, %v912
        %v920 = vmul.f32 %v906, %v915
        %v921 = vmul.f32 %v907, %v914
        %v922 = vmul.f32 %v908, %v912
        %v923 = vmul.f32 %v909, %v915
        %v924 = vmul.f32 %v910, %v914
        %931 = vrot.lane.b32.xlu0 %v919, 127
        %v932 = vpop.permute.xlu0 %931
        %933 = vrot.lane.b32.xlu0 %v920, 127
        %v934 = vpop.permute.xlu0 %933
        %935 = vrot.lane.b32.xlu0 %v921, 127
        %v936 = vpop.permute.xlu0 %935
        %937 = vrot.lane.b32.xlu0 %v922, 127
        %v938 = vpop.permute.xlu0 %937
        %939 = vrot.lane.b32.xlu0 %v923, 127
        %v940 = vpop.permute.xlu0 %939
        %941 = vrot.lane.b32.xlu0 %v924, 127
        %v942 = vpop.permute.xlu0 %941
        %v943 = vsel %vm771, %v932, %v934
        %v944 = vsel %vm771, %v934, %v936
        %v945 = vsel %vm771, %v938, %v940
        %v946 = vsel %vm771, %v940, %v942
        %v950 = vsel %vm554, %v498, 0
        %v952 = vsel %vm558, %v945, 0
        %v954 = vsel %vm558, %v946, 0
        %956 = vmatpush.msra.mxu0 0.0
        %957 = vmatpush.msra.mxu0 0.0
        %958 = vmatpush.msra.mxu0 0.0
        %959 = vmatpush.msra.mxu0 0.0
        %960 = vmatpush.msra.mxu0 0.0
        %961 = vmatpush.msra.mxu0 0.0
        %962 = vmatpush.msra.mxu0 0.0
        %963 = vmatpush.msra.mxu0 0.0
        %964 = vmatpush.msra.mxu0 0.0
        %965 = vmatpush.msra.mxu0 0.0
        %966 = vmatpush.msra.mxu0 0.0
        %967 = vmatpush.msra.mxu0 0.0
        %968 = vmatpush.msra.mxu0 0.0
        %969 = vmatpush.msra.mxu0 0.0
        %970 = vmatpush.msra.mxu0 %v952
        %971 = vmatpush.msra.mxu0 %v943
        %972 = vmatmul.f32.gmra.mxu0 %v950
        %v973 = vpop.f32.mrf.mxu0
        %v974 = vadd.f32 0.0, %v973
        %975 = vdwg.mxu0
        %976 = vmatpush.msra.mxu0 0.0
        %977 = vmatpush.msra.mxu0 0.0
        %978 = vmatpush.msra.mxu0 0.0
        %979 = vmatpush.msra.mxu0 0.0
        %980 = vmatpush.msra.mxu0 0.0
        %981 = vmatpush.msra.mxu0 0.0
        %982 = vmatpush.msra.mxu0 0.0
        %983 = vmatpush.msra.mxu0 0.0
        %984 = vmatpush.msra.mxu0 0.0
        %985 = vmatpush.msra.mxu0 0.0
        %986 = vmatpush.msra.mxu0 0.0
        %987 = vmatpush.msra.mxu0 0.0
        %988 = vmatpush.msra.mxu0 0.0
        %989 = vmatpush.msra.mxu0 0.0
        %990 = vmatpush.msra.mxu0 %v954
        %991 = vmatpush.msra.mxu0 %v944
        %992 = vmatmul.f32.gmra.mxu0 %v950
        %v993 = vpop.f32.mrf.mxu0
        %v994 = vadd.f32 0.0, %v993
        %995 = vdwg.mxu0
        %v996 = vadd.f32 %v903, %v974
        %v997 = vadd.f32 %v904, %v994
        %998 = vrot.lane.b32.xlu0 %v512, 15
        %v999 = vpop.permute.xlu0 %998
        %1000 = vrot.lane.b32.xlu0 %v513, 15
        %v1001 = vpop.permute.xlu0 %1000
        %v1002 = vsel %vm711, %v999, %v1001
        %v1006 = vmul.f32 %v905, %v999
        %v1007 = vmul.f32 %v906, %v1002
        %v1008 = vmul.f32 %v907, %v1001
        %v1009 = vmul.f32 %v908, %v999
        %v1010 = vmul.f32 %v909, %v1002
        %v1011 = vmul.f32 %v910, %v1001
        %1018 = vrot.lane.b32.xlu0 %v1006, 113
        %v1019 = vpop.permute.xlu0 %1018
        %1020 = vrot.lane.b32.xlu0 %v1007, 113
        %v1021 = vpop.permute.xlu0 %1020
        %1022 = vrot.lane.b32.xlu0 %v1008, 113
        %v1023 = vpop.permute.xlu0 %1022
        %1024 = vrot.lane.b32.xlu0 %v1009, 113
        %v1025 = vpop.permute.xlu0 %1024
        %1026 = vrot.lane.b32.xlu0 %v1010, 113
        %v1027 = vpop.permute.xlu0 %1026
        %1028 = vrot.lane.b32.xlu0 %v1011, 113
        %v1029 = vpop.permute.xlu0 %1028
        %v1030 = vsel %vm682, %v1019, %v1021
        %v1031 = vsel %vm682, %v1021, %v1023
        %v1032 = vsel %vm682, %v1025, %v1027
        %v1033 = vsel %vm682, %v1027, %v1029
        %v1037 = vsel %vm554, %v499, 0
        %v1039 = vsel %vm558, %v1032, 0
        %v1041 = vsel %vm558, %v1033, 0
        %1043 = vmatpush.msra.mxu0 0.0
        %1044 = vmatpush.msra.mxu0 0.0
        %1045 = vmatpush.msra.mxu0 0.0
        %1046 = vmatpush.msra.mxu0 0.0
        %1047 = vmatpush.msra.mxu0 0.0
        %1048 = vmatpush.msra.mxu0 0.0
        %1049 = vmatpush.msra.mxu0 0.0
        %1050 = vmatpush.msra.mxu0 0.0
        %1051 = vmatpush.msra.mxu0 0.0
        %1052 = vmatpush.msra.mxu0 0.0
        %1053 = vmatpush.msra.mxu0 0.0
        %1054 = vmatpush.msra.mxu0 0.0
        %1055 = vmatpush.msra.mxu0 0.0
        %1056 = vmatpush.msra.mxu0 0.0
        %1057 = vmatpush.msra.mxu0 %v1039
        %1058 = vmatpush.msra.mxu0 %v1030
        %1059 = vmatmul.f32.gmra.mxu0 %v1037
        %v1060 = vpop.f32.mrf.mxu0
        %v1061 = vadd.f32 0.0, %v1060
        %1062 = vdwg.mxu0
        %1063 = vmatpush.msra.mxu0 0.0
        %1064 = vmatpush.msra.mxu0 0.0
        %1065 = vmatpush.msra.mxu0 0.0
        %1066 = vmatpush.msra.mxu0 0.0
        %1067 = vmatpush.msra.mxu0 0.0
        %1068 = vmatpush.msra.mxu0 0.0
        %1069 = vmatpush.msra.mxu0 0.0
        %1070 = vmatpush.msra.mxu0 0.0
        %1071 = vmatpush.msra.mxu0 0.0
        %1072 = vmatpush.msra.mxu0 0.0
        %1073 = vmatpush.msra.mxu0 0.0
        %1074 = vmatpush.msra.mxu0 0.0
        %1075 = vmatpush.msra.mxu0 0.0
        %1076 = vmatpush.msra.mxu0 0.0
        %1077 = vmatpush.msra.mxu0 %v1041
        %1078 = vmatpush.msra.mxu0 %v1031
        %1079 = vmatmul.f32.gmra.mxu0 %v1037
        %v1080 = vpop.f32.mrf.mxu0
        %v1081 = vadd.f32 0.0, %v1080
        %1082 = vdwg.mxu0
        %v1083 = vadd.f32 %v996, %v1061
        %v1084 = vadd.f32 %v997, %v1081
        %1091 = vrot.lane.b32.xlu0 %v905, 112
        %v1092 = vpop.permute.xlu0 %1091
        %1093 = vrot.lane.b32.xlu0 %v906, 112
        %v1094 = vpop.permute.xlu0 %1093
        %1095 = vrot.lane.b32.xlu0 %v907, 112
        %v1096 = vpop.permute.xlu0 %1095
        %1097 = vrot.lane.b32.xlu0 %v908, 112
        %v1098 = vpop.permute.xlu0 %1097
        %1099 = vrot.lane.b32.xlu0 %v909, 112
        %v1100 = vpop.permute.xlu0 %1099
        %1101 = vrot.lane.b32.xlu0 %v910, 112
        %v1102 = vpop.permute.xlu0 %1101
        %vm1103 = vcmask 916480
        %v1104 = vsel %vm1103, %v1092, %v1094
        %v1105 = vsel %vm1103, %v1094, %v1096
        %v1106 = vsel %vm1103, %v1098, %v1100
        %v1107 = vsel %vm1103, %v1100, %v1102
        %v1111 = vsel %vm554, %v500, 0
        %v1113 = vsel %vm558, %v1106, 0
        %v1115 = vsel %vm558, %v1107, 0
        %1117 = vmatpush.msra.mxu0 0.0
        %1118 = vmatpush.msra.mxu0 0.0
        %1119 = vmatpush.msra.mxu0 0.0
        %1120 = vmatpush.msra.mxu0 0.0
        %1121 = vmatpush.msra.mxu0 0.0
        %1122 = vmatpush.msra.mxu0 0.0
        %1123 = vmatpush.msra.mxu0 0.0
        %1124 = vmatpush.msra.mxu0 0.0
        %1125 = vmatpush.msra.mxu0 0.0
        %1126 = vmatpush.msra.mxu0 0.0
        %1127 = vmatpush.msra.mxu0 0.0
        %1128 = vmatpush.msra.mxu0 0.0
        %1129 = vmatpush.msra.mxu0 0.0
        %1130 = vmatpush.msra.mxu0 0.0
        %1131 = vmatpush.msra.mxu0 %v1113
        %1132 = vmatpush.msra.mxu0 %v1104
        %1133 = vmatmul.f32.gmra.mxu0 %v1111
        %v1134 = vpop.f32.mrf.mxu0
        %v1135 = vadd.f32 0.0, %v1134
        %1136 = vdwg.mxu0
        %1137 = vmatpush.msra.mxu0 0.0
        %1138 = vmatpush.msra.mxu0 0.0
        %1139 = vmatpush.msra.mxu0 0.0
        %1140 = vmatpush.msra.mxu0 0.0
        %1141 = vmatpush.msra.mxu0 0.0
        %1142 = vmatpush.msra.mxu0 0.0
        %1143 = vmatpush.msra.mxu0 0.0
        %1144 = vmatpush.msra.mxu0 0.0
        %1145 = vmatpush.msra.mxu0 0.0
        %1146 = vmatpush.msra.mxu0 0.0
        %1147 = vmatpush.msra.mxu0 0.0
        %1148 = vmatpush.msra.mxu0 0.0
        %1149 = vmatpush.msra.mxu0 0.0
        %1150 = vmatpush.msra.mxu0 0.0
        %1151 = vmatpush.msra.mxu0 %v1115
        %1152 = vmatpush.msra.mxu0 %v1105
        %1153 = vmatmul.f32.gmra.mxu0 %v1111
        %v1154 = vpop.f32.mrf.mxu0
        %v1155 = vadd.f32 0.0, %v1154
        %1156 = vdwg.mxu0
        %v1157 = vadd.f32 %v1083, %v1135
        %v1158 = vadd.f32 %v1084, %v1155
        %1159 = vrot.lane.b32.xlu0 %v676, 17
        %v1160 = vpop.permute.xlu0 %1159
        %1161 = vrot.lane.b32.xlu0 %v677, 17
        %v1162 = vpop.permute.xlu0 %1161
        %v1163 = vsel %vm621, %v1160, %v1162
        %v1167 = vmul.f32 %v905, %v1160
        %v1168 = vmul.f32 %v906, %v1163
        %v1169 = vmul.f32 %v907, %v1162
        %v1170 = vmul.f32 %v908, %v1160
        %v1171 = vmul.f32 %v909, %v1163
        %v1172 = vmul.f32 %v910, %v1162
        %1179 = vrot.lane.b32.xlu0 %v1167, 111
        %v1180 = vpop.permute.xlu0 %1179
        %1181 = vrot.lane.b32.xlu0 %v1168, 111
        %v1182 = vpop.permute.xlu0 %1181
        %1183 = vrot.lane.b32.xlu0 %v1169, 111
        %v1184 = vpop.permute.xlu0 %1183
        %1185 = vrot.lane.b32.xlu0 %v1170, 111
        %v1186 = vpop.permute.xlu0 %1185
        %1187 = vrot.lane.b32.xlu0 %v1171, 111
        %v1188 = vpop.permute.xlu0 %1187
        %1189 = vrot.lane.b32.xlu0 %v1172, 111
        %v1190 = vpop.permute.xlu0 %1189
        %v1191 = vsel %vm518, %v1180, %v1182
        %v1192 = vsel %vm518, %v1182, %v1184
        %v1193 = vsel %vm518, %v1186, %v1188
        %v1194 = vsel %vm518, %v1188, %v1190
        %v1198 = vsel %vm554, %v501, 0
        %v1200 = vsel %vm558, %v1193, 0
        %v1202 = vsel %vm558, %v1194, 0
        %1204 = vmatpush.msra.mxu0 0.0
        %1205 = vmatpush.msra.mxu0 0.0
        %1206 = vmatpush.msra.mxu0 0.0
        %1207 = vmatpush.msra.mxu0 0.0
        %1208 = vmatpush.msra.mxu0 0.0
        %1209 = vmatpush.msra.mxu0 0.0
        %1210 = vmatpush.msra.mxu0 0.0
        %1211 = vmatpush.msra.mxu0 0.0
        %1212 = vmatpush.msra.mxu0 0.0
        %1213 = vmatpush.msra.mxu0 0.0
        %1214 = vmatpush.msra.mxu0 0.0
        %1215 = vmatpush.msra.mxu0 0.0
        %1216 = vmatpush.msra.mxu0 0.0
        %1217 = vmatpush.msra.mxu0 0.0
        %1218 = vmatpush.msra.mxu0 %v1200
        %1219 = vmatpush.msra.mxu0 %v1191
        %1220 = vmatmul.f32.gmra.mxu0 %v1198
        %v1221 = vpop.f32.mrf.mxu0
        %v1222 = vadd.f32 0.0, %v1221
        %1223 = vdwg.mxu0
        %1224 = vmatpush.msra.mxu0 0.0
        %1225 = vmatpush.msra.mxu0 0.0
        %1226 = vmatpush.msra.mxu0 0.0
        %1227 = vmatpush.msra.mxu0 0.0
        %1228 = vmatpush.msra.mxu0 0.0
        %1229 = vmatpush.msra.mxu0 0.0
        %1230 = vmatpush.msra.mxu0 0.0
        %1231 = vmatpush.msra.mxu0 0.0
        %1232 = vmatpush.msra.mxu0 0.0
        %1233 = vmatpush.msra.mxu0 0.0
        %1234 = vmatpush.msra.mxu0 0.0
        %1235 = vmatpush.msra.mxu0 0.0
        %1236 = vmatpush.msra.mxu0 0.0
        %1237 = vmatpush.msra.mxu0 0.0
        %1238 = vmatpush.msra.mxu0 %v1202
        %1239 = vmatpush.msra.mxu0 %v1192
        %1240 = vmatmul.f32.gmra.mxu0 %v1198
        %v1241 = vpop.f32.mrf.mxu0
        %v1242 = vadd.f32 0.0, %v1241
        %1243 = vdwg.mxu0
        %v1244 = vadd.f32 %v1157, %v1222
        %v1245 = vadd.f32 %v1158, %v1242
        %v1246 = vld [vmem:[%s5] sm:$0xf]
        %1248 = vset.pattern.permute.xlu0 0
        %1249 = vperm.xlu0 %1248, %v1246
        %v1250 = vpop.permute.xlu0 %1249
        %v1252 = vadd.f32 %v1244, %v1250
        %v1253 = vadd.f32 %v1245, %v1250
        %v1256 = vrot.slane %v1253, 4
        %v1257 = vsel %vm558, %v1252, %v1256
        %1259 = vst [vmem:[%s396] sm:$0xff] %v1257
        %v1260 = vsel %vm558, %v1252, 0.0
        %v1261 = vsel %vm558, %v1253, 0.0
        %v1262 = vadd.f32 %v1260, %v1261
        %1263 = vadd.xlane.f32.xlu0 %v1262
        %v1264 = vpop.xlane.xlu0 %1263
        %vm1265 = vcmask 3072
        %1266 = vst.msk [vmem:[%s412] sm:$0xf] %vm1265, %v1264
        %v1267 = vmul.f32 %v1252, %v1252
        %v1268 = vmul.f32 %v1253, %v1253
        %v1269 = vsel %vm558, %v1267, 0.0
        %v1270 = vsel %vm558, %v1268, 0.0
        %v1271 = vadd.f32 %v1269, %v1270
        %1272 = vadd.xlane.f32.xlu0 %v1271
        %v1273 = vpop.xlane.xlu0 %1272
        %1274 = vst.msk [vmem:[%s416] sm:$0xf] %vm1265, %v1273
        %s1275 = sand.u32 %s174, 1
        %s1276 = scalar_lea.sflag [#allocation5], %s1275
        %s1277 = sand.u32 %s174, 1
        %s1278 = smul.addr %s1277, 8
        %s1279 = scalar_lea.vmem [#allocation11], %s1278
        %p1280 = scmp.lt.s32.totalorder %s30, 1
        %s1281 = scalar_select %p1280, %s30, 1
        %s1282 = smul.addr %s1281, 4
        %s1283 = scalar_lea.vmem %s7, %s1282
        %p1284 = scmp.lt.s32.totalorder %s30, 1
        %s1285 = scalar_select %p1284, %s30, 1
        %s1286 = smul.addr %s1285, 4
        %s1287 = scalar_lea.vmem %s8, %s1286
        // Predicated region
        $region61: #{tpu_custom_call.1} parent=43 // pred_check
          %p1288 = pneg %p184
        $region62: #{tpu_custom_call.1} parent=43 // pred_check_branch
          %1290 = sbr.rel (%p1288) target = $region64
        $region63: #{tpu_custom_call.1} parent=43 // pred_region
          %1292 = vsyncadd %s1276, 0
          %s1293 = smul.addr %s30, 2
          %s1294 = smul.addr %s1293, 4
          %s1295 = scalar_lea.hbm %s6, %s1294
          %s1297 = sshll.u32 %s1279, 4
          %s1298 = int_to_ptr.vmem [resolvable:$true] %s1297
          %s1299 = sshll.u32 %s1295, 4
          %s1300 = int_to_ptr.hbm [resolvable:$true] %s1299
          %1302 = dma.vmem_to_hbm [thread:$0]  %s1298, 128, %s1300, %s1276
        $region64: #{tpu_custom_call.1} parent=43 // pred_fallthru
          _
        // Predicated region
        $region65: #{tpu_custom_call.1} parent=43 // pred_check
          %p1303 = pneg %p210
        $region66: #{tpu_custom_call.1} parent=43 // pred_check_branch
          %1305 = sbr.rel (%p1303) target = $region68
        $region67: #{tpu_custom_call.1} parent=43 // pred_region
          _
        $region68: #{tpu_custom_call.1} parent=43 // pred_fallthru
          _
        // Predicated region
        $region69: #{tpu_custom_call.1} parent=43 // pred_check
          %p1306 = pneg %p236
        $region70: #{tpu_custom_call.1} parent=43 // pred_check_branch
          %1308 = sbr.rel (%p1306) target = $region72
        $region71: #{tpu_custom_call.1} parent=43 // pred_region
          _
        $region72: #{tpu_custom_call.1} parent=43 // pred_fallthru
          _
      $region44: #{tpu_custom_call.1} parent=5 // pred_fallthru
        _
      %p1309 = scmp.le.s32.totalorder 2, %s25
      // Predicated region
      $region73: #{tpu_custom_call.1} parent=5 // pred_check
        %p1310 = pneg %p1309
      $region74: #{tpu_custom_call.1} parent=5 // pred_check_branch
        %1312 = sbr.rel (%p1310) target = $region76
      $region75: #{tpu_custom_call.1} parent=5 // pred_region
        %s1313 = ssub.s32 %s25, 2
        // Predicated region
        $region77: #{tpu_custom_call.1} parent=75 // pred_check
          %p1314 = pneg %p190
        $region78: #{tpu_custom_call.1} parent=75 // pred_check_branch
          %1316 = sbr.rel (%p1314) target = $region80
        $region79: #{tpu_custom_call.1} parent=75 // pred_region
          %s1317 = sand.u32 %s175, 1
          %s1318 = scalar_lea.sflag [#allocation5], %s1317
          %s1319 = sand.u32 %s175, 1
          %s1320 = smul.addr %s1319, 8
          %s1321 = scalar_lea.vmem [#allocation11], %s1320
          %1323 = dma.done %s1318, 128
        $region80: #{tpu_custom_call.1} parent=75 // pred_fallthru
          _
        // Predicated region
        $region81: #{tpu_custom_call.1} parent=75 // pred_check
          %p1324 = pneg %p216
        $region82: #{tpu_custom_call.1} parent=75 // pred_check_branch
          %1326 = sbr.rel (%p1324) target = $region84
        $region83: #{tpu_custom_call.1} parent=75 // pred_region
          %p1327 = scmp.lt.s32.totalorder %s31, 1
          %s1328 = scalar_select %p1327, %s31, 1
          %s1329 = smul.addr %s1328, 4
          %s1330 = scalar_lea.vmem %s7, %s1329
        $region84: #{tpu_custom_call.1} parent=75 // pred_fallthru
          _
        // Predicated region
        $region85: #{tpu_custom_call.1} parent=75 // pred_check
          %p1331 = pneg %p242
        $region86: #{tpu_custom_call.1} parent=75 // pred_check_branch
          %1333 = sbr.rel (%p1331) target = $region88
        $region87: #{tpu_custom_call.1} parent=75 // pred_region
          %p1334 = scmp.lt.s32.totalorder %s31, 1
          %s1335 = scalar_select %p1334, %s31, 1
          %s1336 = smul.addr %s1335, 4
          %s1337 = scalar_lea.vmem %s8, %s1336
        $region88: #{tpu_custom_call.1} parent=75 // pred_fallthru
          _
      $region76: #{tpu_custom_call.1} parent=5 // pred_fallthru
        _
    $region6: #{tpu_custom_call.1} parent=1 // loop_footer
      %s29 = sadd.s32 1, %s25
    $region7: #{tpu_custom_call.1} parent=1 // loop_footer_branch
      %24 = sbr.rel target = $region3
    $region8: #{tpu_custom_call.1} parent=1 // loop_exit
      _
    %1338 = vsyncpa [#allocation4], 1
    %s1339 = scalar_lea.sflag [#allocation4], 1
    %1340 = vsyncpa %s1339, 1
    %1341 = vsyncpa [#allocation7], 1
    %s1342 = scalar_lea.sflag [#allocation7], 1
    %1343 = vsyncpa %s1342, 1
    %1344 = vsyncpa [#allocation10], 1
    %1345 = vsyncpa [#allocation5], 1
    %s1346 = scalar_lea.sflag [#allocation5], 1
    %1347 = vsyncpa %s1346, 1

</llo_original>
